<compile_context>
chip_gen: v7x
topology: tpu7x:2x2x1
jax: 0.10.0
libtpu: 0.0.40
codegen_flags: <defaults>
</compile_context>

<pallas_src>
import functools
import math

import jax
import jax.numpy as jnp
from jax.experimental import pallas as pl
from jax.experimental.pallas import tpu as pltpu


def _bf16_dot(a, b):
    """MXU matmul: bf16 operands, f32 accumulation."""
    return jnp.dot(a.astype(jnp.bfloat16), b.astype(jnp.bfloat16),
                   preferred_element_type=jnp.float32)


def denoiser_kernel(
    # per-batch inputs
    mel_ref,        # (1, M, T)  noised mel, channels-first
    cond_ref,       # (1, E, T)  conditioner, channels-first
    dstep_ref,      # (1, 1, R)  diffusion-step embedding after the MLP
    # global weights
    in_w_ref, in_b_ref,            # (R, M) bf16, (R, 1) f32
    # per-layer weights (leading dim streamed over the layer grid axis)
    dproj_w_ref,                   # (1, R, R) bf16
    cond_w_ref, cond_b_ref,        # (1, 2R, E) bf16, (1, 2R, 1) f32
    conv_w_ref, conv_b_ref,        # (1, 3, 2R, R) bf16 (taps-major), (1, 2R, 1) f32
    blk_out_w_ref, blk_out_b_ref,  # (1, 2R, R) bf16, (1, 2R, 1) f32
    # global weights
    skip_w_ref, skip_b_ref,        # (R, R) bf16, (R, 1) f32
    final_w_ref, final_b_ref,      # (M, R) bf16, (M, 1) f32
    # output
    out_ref,                       # (1, M, T) f32
    # scratch (persists across the layer grid axis)
    x_sc,                          # (R, T)   f32  hidden state
    skip_sc,                       # (R, T)   f32  skip accumulator
    xpad_sc,                       # (R, T+2) f32  zero-padded conv input
    *, num_layers,
):
    l = pl.program_id(1)
    R, T = x_sc.shape

    # ---- layer 0: input projection (1x1 conv) + ReLU + state init ----
    @pl.when(l == 0)
    def _init():
        x0 = _bf16_dot(in_w_ref[...], mel_ref[0]) + in_b_ref[...]
        x_sc[...] = jnp.maximum(x0, 0.0)
        skip_sc[...] = jnp.zeros_like(skip_sc)
        xpad_sc[...] = jnp.zeros_like(xpad_sc)      # SAME-padding columns stay 0

    x = x_sc[...]                                                     # (R, T)

    # ---- ResidualBlock l ----
    # diffusion_projection (Linear R->R, no bias): elementwise * + lane reduce
    d_row = dstep_ref[0]                                              # (1, R)
    d_proj = jnp.sum(dproj_w_ref[0].astype(jnp.float32) * d_row,
                     axis=1, keepdims=True)                           # (R, 1)
    # conditioner_projection: 1x1 conv E -> 2R
    cond = _bf16_dot(cond_w_ref[0], cond_ref[0]) + cond_b_ref[0]      # (2R, T)

    # conv_layer: k=3 SAME conv R -> 2R via zero-padded scratch + 3 static taps
    xpad_sc[:, 1:T + 1] = x + d_proj
    acc = cond + conv_b_ref[0]
    for kk in range(3):                                               # static taps
        acc = acc + _bf16_dot(conv_w_ref[0, kk], xpad_sc[:, kk:kk + T])

    gate = acc[:R, :]
    filt = acc[R:, :]
    z = jax.nn.sigmoid(gate) * jnp.tanh(filt)                         # (R, T)

    # block output_projection: 1x1 conv R -> 2R, chunk into residual / skip
    o = _bf16_dot(blk_out_w_ref[0], z) + blk_out_b_ref[0]             # (2R, T)
    x_sc[...] = (x + o[:R, :]) * (2.0 ** -0.5)
    skip_sc[...] = skip_sc[...] + o[R:, :]

    # ---- last layer: skip_projection -> ReLU -> output_projection ----
    @pl.when(l == num_layers - 1)
    def _finalize():
        h = skip_sc[...] * (num_layers ** -0.5)
        h = jnp.maximum(_bf16_dot(skip_w_ref[...], h) + skip_b_ref[...], 0.0)
        out_ref[0] = _bf16_dot(final_w_ref[...], h) + final_b_ref[...]


def _diffusion_cond(diffusion_step, params):
    """Sinusoidal diffusion-step embedding + (Linear -> Mish -> Linear) MLP."""
    w1 = params["mlp_w1"].astype(jnp.float32)        # (4R, R)
    w2 = params["mlp_w2"].astype(jnp.float32)        # (R, 4R)
    R = w2.shape[0]
    half = R // 2
    scale = math.log(10000.0) / (half - 1)
    freqs = jnp.exp(-scale * jnp.arange(half, dtype=jnp.float32))
    ang = diffusion_step.astype(jnp.float32)[:, None] * freqs[None, :]
    emb = jnp.concatenate([jnp.sin(ang), jnp.cos(ang)], axis=-1)      # [B, R]
    h = emb @ w1.T
    h = h * jnp.tanh(jax.nn.softplus(h))                              # Mish
    return h @ w2.T                                                   # [B, R]


def denoiser_forward(mel, diffusion_step, conditioner, params, *, num_layers):
    """mel:[B,1,M,T], diffusion_step:[B], conditioner:[B,E,T] -> [B,1,M,T]."""
    B, _, M, T = mel.shape
    E = conditioner.shape[1]
    R = params["skip_w"].shape[0]
    L = num_layers

    mel_bmt = mel[:, 0].astype(jnp.float32)                           # [B, M, T]
    cond_bet = conditioner.astype(jnp.float32)                        # [B, E, T]
    d = _diffusion_cond(diffusion_step, params)[:, None, :]           # [B, 1, R]

    def fixed(shape):
        return pl.BlockSpec(shape, lambda b, l: (0,) * len(shape))

    def per_batch(shape):
        return pl.BlockSpec((1,) + shape, lambda b, l: (b,) + (0,) * len(shape))

    def per_layer(shape):
        return pl.BlockSpec((1,) + shape, lambda b, l: (l,) + (0,) * len(shape))

    kernel = functools.partial(denoiser_kernel, num_layers=L)

    out = pl.pallas_call(
        kernel,
        out_shape=jax.ShapeDtypeStruct((B, M, T), jnp.float32),
        grid=(B, L),
        in_specs=[
            per_batch((M, T)),                                  # mel
            per_batch((E, T)),                                  # conditioner
            per_batch((1, R)),                                  # diffusion cond (post MLP)
            fixed((R, M)), fixed((R, 1)),                       # input_projection
            per_layer((R, R)),                                  # diffusion_projection
            per_layer((2 * R, E)), per_layer((2 * R, 1)),       # conditioner_projection
            per_layer((3, 2 * R, R)), per_layer((2 * R, 1)),    # conv_layer (k=3)
            per_layer((2 * R, R)), per_layer((2 * R, 1)),       # block output_projection
            fixed((R, R)), fixed((R, 1)),                       # skip_projection
            fixed((M, R)), fixed((M, 1)),                       # output_projection
        ],
        out_specs=per_batch((M, T)),
        scratch_shapes=[
            pltpu.VMEM((R, T), jnp.float32),                    # x (hidden state)
            pltpu.VMEM((R, T), jnp.float32),                    # skip accumulator
            pltpu.VMEM((R, T + 2), jnp.float32),                # zero-padded conv input
        ],
        compiler_params=pltpu.CompilerParams(
            dimension_semantics=("parallel", "arbitrary"),
            vmem_limit_bytes=32 * 1024 * 1024,
        ),
    )(
        mel_bmt, cond_bet, d,
        params["in_w"], params["in_b"],
        params["dproj_w"],
        params["cond_w"], params["cond_b"],
        params["conv_w"], params["conv_b"],
        params["blk_out_w"], params["blk_out_b"],
        params["skip_w"], params["skip_b"],
        params["final_w"], params["final_b"],
    )
    return out[:, None, :, :]


def denoiser_reference(mel, diffusion_step, conditioner, params, *, num_layers):
    """Pure-JAX reference mirroring the kernel's bf16-matmul / f32-accumulate math."""
    f32 = jnp.float32
    B, _, M, T = mel.shape
    R = params["skip_w"].shape[0]
    mm = jax.vmap(_bf16_dot, in_axes=(None, 0))      # batched (W, x[b]) matmul

    x = jnp.maximum(mm(params["in_w"], mel[:, 0].astype(f32)) + params["in_b"][None], 0.0)
    d = _diffusion_cond(diffusion_step, params)                       # [B, R]
    cond = conditioner.astype(f32)
    skip_sum = jnp.zeros_like(x)
    for l in range(num_layers):
        dp = jnp.sum(params["dproj_w"][l].astype(f32)[None] * d[:, None, :],
                     axis=-1, keepdims=True)                          # [B, R, 1]
        c = mm(params["cond_w"][l], cond) + params["cond_b"][l][None]
        y = x + dp
        ypad = jnp.pad(y, ((0, 0), (0, 0), (1, 1)))
        acc = c + params["conv_b"][l][None]
        for kk in range(3):
            acc = acc + mm(params["conv_w"][l, kk], ypad[:, :, kk:kk + T])
        z = jax.nn.sigmoid(acc[:, :R]) * jnp.tanh(acc[:, R:])
        o = mm(params["blk_out_w"][l], z) + params["blk_out_b"][l][None]
        x = (x + o[:, :R]) / math.sqrt(2.0)
        skip_sum = skip_sum + o[:, R:]
    h = skip_sum / math.sqrt(num_layers)
    h = jnp.maximum(mm(params["skip_w"], h) + params["skip_b"][None], 0.0)
    out = mm(params["final_w"], h) + params["final_b"][None]
    return out[:, None, :, :]


def init_params(key, *, n_mel, d_encoder, residual_channels, residual_layers):
    M, E, R, L = n_mel, d_encoder, residual_channels, residual_layers
    f32, bf16 = jnp.float32, jnp.bfloat16
    keys = iter(jax.random.split(key, 16))

    def kaiming(shape, fan_in):
        return jax.random.normal(next(keys), shape, f32) * math.sqrt(2.0 / fan_in)

    def xavier(shape, fan_in, fan_out):
        lim = math.sqrt(6.0 / (fan_in + fan_out))
        return jax.random.uniform(next(keys), shape, f32, -lim, lim)

    def cbias(shape, fan_in):
        lim = 1.0 / math.sqrt(fan_in)
        return jax.random.uniform(next(keys), shape, f32, -lim, lim)

    return {
        # input_projection: Conv1d(M, R, k=1)
        "in_w": kaiming((R, M), M).astype(bf16),
        "in_b": cbias((R, 1), M),
        # diffusion MLP (LinearNorm, bias=False) - used in the JAX wrapper
        "mlp_w1": xavier((4 * R, R), R, 4 * R),
        "mlp_w2": xavier((R, 4 * R), 4 * R, R),
        # per-layer ResidualBlock weights, stacked over the layer axis
        "dproj_w": xavier((L, R, R), R, R).astype(bf16),
        "cond_w": kaiming((L, 2 * R, E), E).astype(bf16),
        "cond_b": cbias((L, 2 * R, 1), E),
        "conv_w": kaiming((L, 3, 2 * R, R), 3 * R).astype(bf16),      # taps-major
        "conv_b": cbias((L, 2 * R, 1), 3 * R),
        "blk_out_w": kaiming((L, 2 * R, R), R).astype(bf16),
        "blk_out_b": cbias((L, 2 * R, 1), R),
        # skip_projection: Conv1d(R, R, k=1)
        "skip_w": kaiming((R, R), R).astype(bf16),
        "skip_b": cbias((R, 1), R),
        # output_projection: Conv1d(R, M, k=1).  torch zero-inits this weight;
        # a small random init is used here so the smoke test exercises the path.
        "final_w": (0.1 * jax.random.normal(next(keys), (M, R), f32)).astype(bf16),
        "final_b": cbias((M, 1), R),
    }


if __name__ == "__main__":
    # Small shapes: B=2, n_mel_channels=16, encoder_hidden=32,
    # residual_channels=32, residual_layers=4, T=16 frames.
    B, M, E, R, L, T = 2, 16, 32, 32, 4, 16

    key = jax.random.PRNGKey(0)
    k_mel, k_cond, k_step, k_par = jax.random.split(key, 4)
    mel = jax.random.normal(k_mel, (B, 1, M, T), jnp.float32)
    conditioner = jax.random.normal(k_cond, (B, E, T), jnp.float32)
    diffusion_step = jax.random.randint(k_step, (B,), 0, 100).astype(jnp.float32)
    params = init_params(k_par, n_mel=M, d_encoder=E,
                         residual_channels=R, residual_layers=L)

    out = denoiser_forward(mel, diffusion_step, conditioner, params, num_layers=L)
    out = jax.block_until_ready(out)
    assert out.shape == (B, 1, M, T)

    ref = denoiser_reference(mel, diffusion_step, conditioner, params, num_layers=L)
    err = float(jnp.max(jnp.abs(out - ref)))
    assert err < 5e-3, f"kernel vs reference mismatch: max abs err = {err}"
    print("KERNEL_OK")
</pallas_src>

<mosaic_0001>
module attributes {stable_mosaic.version = 11 : i64} {
  func.func @denoiser_kernel(%arg0: i32, %arg1: i32, %arg2: memref<1x16x16xf32, #tpu.memory_space<vmem>>, %arg3: memref<1x32x16xf32, #tpu.memory_space<vmem>>, %arg4: memref<1x1x32xf32, #tpu.memory_space<vmem>>, %arg5: memref<32x16xbf16, #tpu.memory_space<vmem>>, %arg6: memref<32x1xf32, #tpu.memory_space<vmem>>, %arg7: memref<1x32x32xbf16, #tpu.memory_space<vmem>>, %arg8: memref<1x64x32xbf16, #tpu.memory_space<vmem>>, %arg9: memref<1x64x1xf32, #tpu.memory_space<vmem>>, %arg10: memref<1x3x64x32xbf16, #tpu.memory_space<vmem>>, %arg11: memref<1x64x1xf32, #tpu.memory_space<vmem>>, %arg12: memref<1x64x32xbf16, #tpu.memory_space<vmem>>, %arg13: memref<1x64x1xf32, #tpu.memory_space<vmem>>, %arg14: memref<32x32xbf16, #tpu.memory_space<vmem>>, %arg15: memref<32x1xf32, #tpu.memory_space<vmem>>, %arg16: memref<16x32xbf16, #tpu.memory_space<vmem>>, %arg17: memref<16x1xf32, #tpu.memory_space<vmem>>, %arg18: memref<1x16x16xf32, #tpu.memory_space<vmem>>, %arg19: memref<32x16xf32, #tpu.memory_space<vmem>>, %arg20: memref<32x16xf32, #tpu.memory_space<vmem>>, %arg21: memref<32x18xf32, #tpu.memory_space<vmem>>) attributes {dimension_semantics = [#tpu.dimension_semantics<parallel>, #tpu.dimension_semantics<arbitrary>], iteration_bounds = array<i64: 2, 4>, scalar_prefetch = 0 : i64, scratch_operands = 3 : i64, tpu.core_type = #tpu.core_type<tc>, window_params = [{transform_indices = @transform_0, window_bounds = array<i64: 1, 16, 16>}, {transform_indices = @transform_1, window_bounds = array<i64: 1, 32, 16>}, {transform_indices = @transform_2, window_bounds = array<i64: 1, 1, 32>}, {pipeline_mode = #tpu.pipeline_mode<synchronous>, transform_indices = @transform_3, window_bounds = array<i64: 32, 16>}, {pipeline_mode = #tpu.pipeline_mode<synchronous>, transform_indices = @transform_4, window_bounds = array<i64: 32, 1>}, {transform_indices = @transform_5, window_bounds = array<i64: 1, 32, 32>}, {transform_indices = @transform_6, window_bounds = array<i64: 1, 64, 32>}, {transform_indices = @transform_7, window_bounds = array<i64: 1, 64, 1>}, {transform_indices = @transform_8, window_bounds = array<i64: 1, 3, 64, 32>}, {transform_indices = @transform_9, window_bounds = array<i64: 1, 64, 1>}, {transform_indices = @transform_10, window_bounds = array<i64: 1, 64, 32>}, {transform_indices = @transform_11, window_bounds = array<i64: 1, 64, 1>}, {pipeline_mode = #tpu.pipeline_mode<synchronous>, transform_indices = @transform_12, window_bounds = array<i64: 32, 32>}, {pipeline_mode = #tpu.pipeline_mode<synchronous>, transform_indices = @transform_13, window_bounds = array<i64: 32, 1>}, {pipeline_mode = #tpu.pipeline_mode<synchronous>, transform_indices = @transform_14, window_bounds = array<i64: 16, 32>}, {pipeline_mode = #tpu.pipeline_mode<synchronous>, transform_indices = @transform_15, window_bounds = array<i64: 16, 1>}, {transform_indices = @transform_16, window_bounds = array<i64: 1, 16, 16>}]} {
    %c0_i32 = arith.constant 0 : i32
    %0 = arith.cmpi eq, %arg1, %c0_i32 : i32
    %1 = arith.extui %0 : i1 to i32
    %c0_i32_0 = arith.constant 0 : i32
    %2 = arith.cmpi ne, %1, %c0_i32_0 : i32
    scf.if %2 {
      %c0_58 = arith.constant 0 : index
      %c0_59 = arith.constant 0 : index
      %77 = vector.load %arg5[%c0_58, %c0_59] : memref<32x16xbf16, #tpu.memory_space<vmem>>, vector<32x16xbf16>
      %c0_60 = arith.constant 0 : index
      %c0_61 = arith.constant 0 : index
      %c0_62 = arith.constant 0 : index
      %78 = vector.load %arg2[%c0_60, %c0_61, %c0_62] : memref<1x16x16xf32, #tpu.memory_space<vmem>>, vector<1x16x16xf32>
      %79 = vector.shape_cast %78 : vector<1x16x16xf32> to vector<16x16xf32>
      %80 = arith.truncf %79 : vector<16x16xf32> to vector<16x16xbf16>
      %cst_63 = arith.constant dense<0.000000e+00> : vector<32x16xf32>
      %81 = tpu.matmul %77, %80, %cst_63 {dimension_numbers = #tpu.dot_dimension_numbers<[1], [0], [0], [1], [0, 0, 1, 1], [], []>} : vector<32x16xbf16>, vector<16x16xbf16>, vector<32x16xf32> -> vector<32x16xf32>
      %c0_64 = arith.constant 0 : index
      %c0_65 = arith.constant 0 : index
      %82 = vector.load %arg6[%c0_64, %c0_65] : memref<32x1xf32, #tpu.memory_space<vmem>>, vector<32x1xf32>
      %83 = vector.broadcast %82 : vector<32x1xf32> to vector<32x16xf32>
      %84 = arith.addf %81, %83 : vector<32x16xf32>
      %cst_66 = arith.constant 0.000000e+00 : f32
      %85 = vector.broadcast %cst_66 : f32 to vector<32x16xf32>
      %86 = arith.maximumf %84, %85 : vector<32x16xf32>
      %c0_67 = arith.constant 0 : index
      %c0_68 = arith.constant 0 : index
      %87 = vector.load %arg19[%c0_67, %c0_68] : memref<32x16xf32, #tpu.memory_space<vmem>>, vector<32x16xf32>
      tpu.vector_store %arg19[%c0_67, %c0_68], %86 {strides = array<i32>} : memref<32x16xf32, #tpu.memory_space<vmem>>, vector<32x16xf32>,
      %cst_69 = arith.constant 0.000000e+00 : f32
      %88 = vector.broadcast %cst_69 : f32 to vector<32x16xf32>
      %c0_70 = arith.constant 0 : index
      %c0_71 = arith.constant 0 : index
      %89 = vector.load %arg20[%c0_70, %c0_71] : memref<32x16xf32, #tpu.memory_space<vmem>>, vector<32x16xf32>
      tpu.vector_store %arg20[%c0_70, %c0_71], %88 {strides = array<i32>} : memref<32x16xf32, #tpu.memory_space<vmem>>, vector<32x16xf32>,
      %cst_72 = arith.constant 0.000000e+00 : f32
      %90 = vector.broadcast %cst_72 : f32 to vector<32x18xf32>
      %c0_73 = arith.constant 0 : index
      %c0_74 = arith.constant 0 : index
      %91 = vector.load %arg21[%c0_73, %c0_74] : memref<32x18xf32, #tpu.memory_space<vmem>>, vector<32x18xf32>
      tpu.vector_store %arg21[%c0_73, %c0_74], %90 {strides = array<i32>} : memref<32x18xf32, #tpu.memory_space<vmem>>, vector<32x18xf32>,
    } else {
    }
    %c0 = arith.constant 0 : index
    %c0_1 = arith.constant 0 : index
    %3 = vector.load %arg19[%c0, %c0_1] : memref<32x16xf32, #tpu.memory_space<vmem>>, vector<32x16xf32>
    %c0_2 = arith.constant 0 : index
    %c0_3 = arith.constant 0 : index
    %c0_4 = arith.constant 0 : index
    %4 = vector.load %arg4[%c0_2, %c0_3, %c0_4] : memref<1x1x32xf32, #tpu.memory_space<vmem>>, vector<1x1x32xf32>
    %5 = vector.shape_cast %4 : vector<1x1x32xf32> to vector<1x32xf32>
    %c0_5 = arith.constant 0 : index
    %c0_6 = arith.constant 0 : index
    %c0_7 = arith.constant 0 : index
    %6 = vector.load %arg7[%c0_5, %c0_6, %c0_7] : memref<1x32x32xbf16, #tpu.memory_space<vmem>>, vector<1x32x32xbf16>
    %7 = vector.shape_cast %6 : vector<1x32x32xbf16> to vector<32x32xbf16>
    %8 = arith.extf %7 : vector<32x32xbf16> to vector<32x32xf32>
    %9 = vector.broadcast %5 : vector<1x32xf32> to vector<32x32xf32>
    %10 = arith.mulf %8, %9 : vector<32x32xf32>
    %cst = arith.constant dense<0.000000e+00> : vector<32xf32>
    %11 = vector.multi_reduction <add>, %10, %cst [1] : vector<32x32xf32> to vector<32xf32>
    %12 = vector.shape_cast %11 : vector<32xf32> to vector<32x1xf32>
    %c0_8 = arith.constant 0 : index
    %c0_9 = arith.constant 0 : index
    %c0_10 = arith.constant 0 : index
    %13 = vector.load %arg8[%c0_8, %c0_9, %c0_10] : memref<1x64x32xbf16, #tpu.memory_space<vmem>>, vector<1x64x32xbf16>
    %14 = vector.shape_cast %13 : vector<1x64x32xbf16> to vector<64x32xbf16>
    %c0_11 = arith.constant 0 : index
    %c0_12 = arith.constant 0 : index
    %c0_13 = arith.constant 0 : index
    %15 = vector.load %arg3[%c0_11, %c0_12, %c0_13] : memref<1x32x16xf32, #tpu.memory_space<vmem>>, vector<1x32x16xf32>
    %16 = vector.shape_cast %15 : vector<1x32x16xf32> to vector<32x16xf32>
    %17 = arith.truncf %16 : vector<32x16xf32> to vector<32x16xbf16>
    %cst_14 = arith.constant dense<0.000000e+00> : vector<64x16xf32>
    %18 = tpu.matmul %14, %17, %cst_14 {dimension_numbers = #tpu.dot_dimension_numbers<[1], [0], [0], [1], [0, 0, 1, 1], [], []>} : vector<64x32xbf16>, vector<32x16xbf16>, vector<64x16xf32> -> vector<64x16xf32>
    %c0_15 = arith.constant 0 : index
    %c0_16 = arith.constant 0 : index
    %c0_17 = arith.constant 0 : index
    %19 = vector.load %arg9[%c0_15, %c0_16, %c0_17] : memref<1x64x1xf32, #tpu.memory_space<vmem>>, vector<1x64x1xf32>
    %20 = vector.shape_cast %19 : vector<1x64x1xf32> to vector<64x1xf32>
    %21 = vector.broadcast %20 : vector<64x1xf32> to vector<64x16xf32>
    %22 = arith.addf %18, %21 : vector<64x16xf32>
    %23 = vector.broadcast %12 : vector<32x1xf32> to vector<32x16xf32>
    %24 = arith.addf %3, %23 : vector<32x16xf32>
    %c0_18 = arith.constant 0 : index
    %c1 = arith.constant 1 : index
    %25 = vector.load %arg21[%c0_18, %c1] : memref<32x18xf32, #tpu.memory_space<vmem>>, vector<32x16xf32>
    tpu.vector_store %arg21[%c0_18, %c1], %24 {strides = array<i32>} : memref<32x18xf32, #tpu.memory_space<vmem>>, vector<32x16xf32>,
    %c0_19 = arith.constant 0 : index
    %c0_20 = arith.constant 0 : index
    %c0_21 = arith.constant 0 : index
    %26 = vector.load %arg11[%c0_19, %c0_20, %c0_21] : memref<1x64x1xf32, #tpu.memory_space<vmem>>, vector<1x64x1xf32>
    %27 = vector.shape_cast %26 : vector<1x64x1xf32> to vector<64x1xf32>
    %28 = vector.broadcast %27 : vector<64x1xf32> to vector<64x16xf32>
    %29 = arith.addf %22, %28 : vector<64x16xf32>
    %c0_22 = arith.constant 0 : index
    %c0_23 = arith.constant 0 : index
    %c0_24 = arith.constant 0 : index
    %c0_25 = arith.constant 0 : index
    %30 = vector.load %arg10[%c0_22, %c0_23, %c0_24, %c0_25] : memref<1x3x64x32xbf16, #tpu.memory_space<vmem>>, vector<1x1x64x32xbf16>
    %31 = vector.shape_cast %30 : vector<1x1x64x32xbf16> to vector<64x32xbf16>
    %c0_26 = arith.constant 0 : index
    %c0_27 = arith.constant 0 : index
    %32 = vector.load %arg21[%c0_26, %c0_27] : memref<32x18xf32, #tpu.memory_space<vmem>>, vector<32x16xf32>
    %33 = arith.truncf %32 : vector<32x16xf32> to vector<32x16xbf16>
    %cst_28 = arith.constant dense<0.000000e+00> : vector<64x16xf32>
    %34 = tpu.matmul %31, %33, %cst_28 {dimension_numbers = #tpu.dot_dimension_numbers<[1], [0], [0], [1], [0, 0, 1, 1], [], []>} : vector<64x32xbf16>, vector<32x16xbf16>, vector<64x16xf32> -> vector<64x16xf32>
    %35 = arith.addf %29, %34 : vector<64x16xf32>
    %c0_29 = arith.constant 0 : index
    %c1_30 = arith.constant 1 : index
    %c0_31 = arith.constant 0 : index
    %c0_32 = arith.constant 0 : index
    %36 = vector.load %arg10[%c0_29, %c1_30, %c0_31, %c0_32] : memref<1x3x64x32xbf16, #tpu.memory_space<vmem>>, vector<1x1x64x32xbf16>
    %37 = vector.shape_cast %36 : vector<1x1x64x32xbf16> to vector<64x32xbf16>
    %c0_33 = arith.constant 0 : index
    %c1_34 = arith.constant 1 : index
    %38 = vector.load %arg21[%c0_33, %c1_34] : memref<32x18xf32, #tpu.memory_space<vmem>>, vector<32x16xf32>
    %39 = arith.truncf %38 : vector<32x16xf32> to vector<32x16xbf16>
    %cst_35 = arith.constant dense<0.000000e+00> : vector<64x16xf32>
    %40 = tpu.matmul %37, %39, %cst_35 {dimension_numbers = #tpu.dot_dimension_numbers<[1], [0], [0], [1], [0, 0, 1, 1], [], []>} : vector<64x32xbf16>, vector<32x16xbf16>, vector<64x16xf32> -> vector<64x16xf32>
    %41 = arith.addf %35, %40 : vector<64x16xf32>
    %c0_36 = arith.constant 0 : index
    %c2 = arith.constant 2 : index
    %c0_37 = arith.constant 0 : index
    %c0_38 = arith.constant 0 : index
    %42 = vector.load %arg10[%c0_36, %c2, %c0_37, %c0_38] : memref<1x3x64x32xbf16, #tpu.memory_space<vmem>>, vector<1x1x64x32xbf16>
    %43 = vector.shape_cast %42 : vector<1x1x64x32xbf16> to vector<64x32xbf16>
    %c0_39 = arith.constant 0 : index
    %c2_40 = arith.constant 2 : index
    %44 = vector.load %arg21[%c0_39, %c2_40] : memref<32x18xf32, #tpu.memory_space<vmem>>, vector<32x16xf32>
    %45 = arith.truncf %44 : vector<32x16xf32> to vector<32x16xbf16>
    %cst_41 = arith.constant dense<0.000000e+00> : vector<64x16xf32>
    %46 = tpu.matmul %43, %45, %cst_41 {dimension_numbers = #tpu.dot_dimension_numbers<[1], [0], [0], [1], [0, 0, 1, 1], [], []>} : vector<64x32xbf16>, vector<32x16xbf16>, vector<64x16xf32> -> vector<64x16xf32>
    %47 = arith.addf %41, %46 : vector<64x16xf32>
    %48 = vector.extract_strided_slice %47 {offsets = [0, 0], sizes = [32, 16], strides = [1, 1]} : vector<64x16xf32> to vector<32x16xf32>
    %49 = vector.extract_strided_slice %47 {offsets = [32, 0], sizes = [32, 16], strides = [1, 1]} : vector<64x16xf32> to vector<32x16xf32>
    %50 = arith.negf %48 : vector<32x16xf32>
    %51 = math.exp %50 : vector<32x16xf32>
    %cst_42 = arith.constant 1.000000e+00 : f32
    %52 = vector.broadcast %cst_42 : f32 to vector<32x16xf32>
    %53 = arith.addf %52, %51 : vector<32x16xf32>
    %54 = arith.divf %52, %53 : vector<32x16xf32>
    %55 = math.tanh %49 : vector<32x16xf32>
    %56 = arith.mulf %54, %55 : vector<32x16xf32>
    %c0_43 = arith.constant 0 : index
    %c0_44 = arith.constant 0 : index
    %c0_45 = arith.constant 0 : index
    %57 = vector.load %arg12[%c0_43, %c0_44, %c0_45] : memref<1x64x32xbf16, #tpu.memory_space<vmem>>, vector<1x64x32xbf16>
    %58 = vector.shape_cast %57 : vector<1x64x32xbf16> to vector<64x32xbf16>
    %59 = arith.truncf %56 : vector<32x16xf32> to vector<32x16xbf16>
    %cst_46 = arith.constant dense<0.000000e+00> : vector<64x16xf32>
    %60 = tpu.matmul %58, %59, %cst_46 {dimension_numbers = #tpu.dot_dimension_numbers<[1], [0], [0], [1], [0, 0, 1, 1], [], []>} : vector<64x32xbf16>, vector<32x16xbf16>, vector<64x16xf32> -> vector<64x16xf32>
    %c0_47 = arith.constant 0 : index
    %c0_48 = arith.constant 0 : index
    %c0_49 = arith.constant 0 : index
    %61 = vector.load %arg13[%c0_47, %c0_48, %c0_49] : memref<1x64x1xf32, #tpu.memory_space<vmem>>, vector<1x64x1xf32>
    %62 = vector.shape_cast %61 : vector<1x64x1xf32> to vector<64x1xf32>
    %63 = vector.broadcast %62 : vector<64x1xf32> to vector<64x16xf32>
    %64 = arith.addf %60, %63 : vector<64x16xf32>
    %65 = vector.extract_strided_slice %64 {offsets = [0, 0], sizes = [32, 16], strides = [1, 1]} : vector<64x16xf32> to vector<32x16xf32>
    %66 = arith.addf %3, %65 : vector<32x16xf32>
    %cst_50 = arith.constant 0.707106769 : f32
    %67 = vector.broadcast %cst_50 : f32 to vector<32x16xf32>
    %68 = arith.mulf %66, %67 : vector<32x16xf32>
    %c0_51 = arith.constant 0 : index
    %c0_52 = arith.constant 0 : index
    %69 = vector.load %arg19[%c0_51, %c0_52] : memref<32x16xf32, #tpu.memory_space<vmem>>, vector<32x16xf32>
    tpu.vector_store %arg19[%c0_51, %c0_52], %68 {strides = array<i32>} : memref<32x16xf32, #tpu.memory_space<vmem>>, vector<32x16xf32>,
    %c0_53 = arith.constant 0 : index
    %c0_54 = arith.constant 0 : index
    %70 = vector.load %arg20[%c0_53, %c0_54] : memref<32x16xf32, #tpu.memory_space<vmem>>, vector<32x16xf32>
    %71 = vector.extract_strided_slice %64 {offsets = [32, 0], sizes = [32, 16], strides = [1, 1]} : vector<64x16xf32> to vector<32x16xf32>
    %72 = arith.addf %70, %71 : vector<32x16xf32>
    %c0_55 = arith.constant 0 : index
    %c0_56 = arith.constant 0 : index
    %73 = vector.load %arg20[%c0_55, %c0_56] : memref<32x16xf32, #tpu.memory_space<vmem>>, vector<32x16xf32>
    tpu.vector_store %arg20[%c0_55, %c0_56], %72 {strides = array<i32>} : memref<32x16xf32, #tpu.memory_space<vmem>>, vector<32x16xf32>,
    %c3_i32 = arith.constant 3 : i32
    %74 = arith.cmpi eq, %arg1, %c3_i32 : i32
    %75 = arith.extui %74 : i1 to i32
    %c0_i32_57 = arith.constant 0 : i32
    %76 = arith.cmpi ne, %75, %c0_i32_57 : i32
    scf.if %76 {
      %c0_58 = arith.constant 0 : index
      %c0_59 = arith.constant 0 : index
      %77 = vector.load %arg20[%c0_58, %c0_59] : memref<32x16xf32, #tpu.memory_space<vmem>>, vector<32x16xf32>
      %cst_60 = arith.constant 5.000000e-01 : f32
      %78 = vector.broadcast %cst_60 : f32 to vector<32x16xf32>
      %79 = arith.mulf %77, %78 : vector<32x16xf32>
      %c0_61 = arith.constant 0 : index
      %c0_62 = arith.constant 0 : index
      %80 = vector.load %arg14[%c0_61, %c0_62] : memref<32x32xbf16, #tpu.memory_space<vmem>>, vector<32x32xbf16>
      %81 = arith.truncf %79 : vector<32x16xf32> to vector<32x16xbf16>
      %cst_63 = arith.constant dense<0.000000e+00> : vector<32x16xf32>
      %82 = tpu.matmul %80, %81, %cst_63 {dimension_numbers = #tpu.dot_dimension_numbers<[1], [0], [0], [1], [0, 0, 1, 1], [], []>} : vector<32x32xbf16>, vector<32x16xbf16>, vector<32x16xf32> -> vector<32x16xf32>
      %c0_64 = arith.constant 0 : index
      %c0_65 = arith.constant 0 : index
      %83 = vector.load %arg15[%c0_64, %c0_65] : memref<32x1xf32, #tpu.memory_space<vmem>>, vector<32x1xf32>
      %84 = vector.broadcast %83 : vector<32x1xf32> to vector<32x16xf32>
      %85 = arith.addf %82, %84 : vector<32x16xf32>
      %cst_66 = arith.constant 0.000000e+00 : f32
      %86 = vector.broadcast %cst_66 : f32 to vector<32x16xf32>
      %87 = arith.maximumf %85, %86 : vector<32x16xf32>
      %c0_67 = arith.constant 0 : index
      %c0_68 = arith.constant 0 : index
      %88 = vector.load %arg16[%c0_67, %c0_68] : memref<16x32xbf16, #tpu.memory_space<vmem>>, vector<16x32xbf16>
      %89 = arith.truncf %87 : vector<32x16xf32> to vector<32x16xbf16>
      %cst_69 = arith.constant dense<0.000000e+00> : vector<16x16xf32>
      %90 = tpu.matmul %88, %89, %cst_69 {dimension_numbers = #tpu.dot_dimension_numbers<[1], [0], [0], [1], [0, 0, 1, 1], [], []>} : vector<16x32xbf16>, vector<32x16xbf16>, vector<16x16xf32> -> vector<16x16xf32>
      %c0_70 = arith.constant 0 : index
      %c0_71 = arith.constant 0 : index
      %91 = vector.load %arg17[%c0_70, %c0_71] : memref<16x1xf32, #tpu.memory_space<vmem>>, vector<16x1xf32>
      %92 = vector.broadcast %91 : vector<16x1xf32> to vector<16x16xf32>
      %93 = arith.addf %90, %92 : vector<16x16xf32>
      %c0_72 = arith.constant 0 : index
      %c0_73 = arith.constant 0 : index
      %c0_74 = arith.constant 0 : index
      %94 = vector.load %arg18[%c0_72, %c0_73, %c0_74] : memref<1x16x16xf32, #tpu.memory_space<vmem>>, vector<1x16x16xf32>
      %95 = vector.shape_cast %94 : vector<1x16x16xf32> to vector<16x16xf32>
      %96 = vector.shape_cast %93 : vector<16x16xf32> to vector<1x16x16xf32>
      tpu.vector_store %arg18[%c0_72, %c0_73, %c0_74], %96 {strides = array<i32>} : memref<1x16x16xf32, #tpu.memory_space<vmem>>, vector<1x16x16xf32>,
    } else {
    }
    return
  }
  func.func @transform_0(%arg0: i32, %arg1: i32) -> (i32, i32, i32) {
    %c0_i32 = arith.constant 0 : i32
    %c0_i32_0 = arith.constant 0 : i32
    %c0_i32_1 = arith.constant 0 : i32
    return %arg0, %c0_i32, %c0_i32_0 : i32, i32, i32
  }
  func.func @transform_1(%arg0: i32, %arg1: i32) -> (i32, i32, i32) {
    %c0_i32 = arith.constant 0 : i32
    %c0_i32_0 = arith.constant 0 : i32
    %c0_i32_1 = arith.constant 0 : i32
    return %arg0, %c0_i32, %c0_i32_0 : i32, i32, i32
  }
  func.func @transform_2(%arg0: i32, %arg1: i32) -> (i32, i32, i32) {
    %c0_i32 = arith.constant 0 : i32
    %c0_i32_0 = arith.constant 0 : i32
    %c0_i32_1 = arith.constant 0 : i32
    return %arg0, %c0_i32, %c0_i32_0 : i32, i32, i32
  }
  func.func @transform_3(%arg0: i32, %arg1: i32) -> (i32, i32) {
    %c0_i32 = arith.constant 0 : i32
    %c0_i32_0 = arith.constant 0 : i32
    %c0_i32_1 = arith.constant 0 : i32
    return %c0_i32, %c0_i32_0 : i32, i32
  }
  func.func @transform_4(%arg0: i32, %arg1: i32) -> (i32, i32) {
    %c0_i32 = arith.constant 0 : i32
    %c0_i32_0 = arith.constant 0 : i32
    %c0_i32_1 = arith.constant 0 : i32
    return %c0_i32, %c0_i32_0 : i32, i32
  }
  func.func @transform_5(%arg0: i32, %arg1: i32) -> (i32, i32, i32) {
    %c0_i32 = arith.constant 0 : i32
    %c0_i32_0 = arith.constant 0 : i32
    %c0_i32_1 = arith.constant 0 : i32
    return %arg1, %c0_i32, %c0_i32_0 : i32, i32, i32
  }
  func.func @transform_6(%arg0: i32, %arg1: i32) -> (i32, i32, i32) {
    %c0_i32 = arith.constant 0 : i32
    %c0_i32_0 = arith.constant 0 : i32
    %c0_i32_1 = arith.constant 0 : i32
    return %arg1, %c0_i32, %c0_i32_0 : i32, i32, i32
  }
  func.func @transform_7(%arg0: i32, %arg1: i32) -> (i32, i32, i32) {
    %c0_i32 = arith.constant 0 : i32
    %c0_i32_0 = arith.constant 0 : i32
    %c0_i32_1 = arith.constant 0 : i32
    return %arg1, %c0_i32, %c0_i32_0 : i32, i32, i32
  }
  func.func @transform_8(%arg0: i32, %arg1: i32) -> (i32, i32, i32, i32) {
    %c0_i32 = arith.constant 0 : i32
    %c0_i32_0 = arith.constant 0 : i32
    %c0_i32_1 = arith.constant 0 : i32
    %c0_i32_2 = arith.constant 0 : i32
    return %arg1, %c0_i32, %c0_i32_0, %c0_i32_1 : i32, i32, i32, i32
  }
  func.func @transform_9(%arg0: i32, %arg1: i32) -> (i32, i32, i32) {
    %c0_i32 = arith.constant 0 : i32
    %c0_i32_0 = arith.constant 0 : i32
    %c0_i32_1 = arith.constant 0 : i32
    return %arg1, %c0_i32, %c0_i32_0 : i32, i32, i32
  }
  func.func @transform_10(%arg0: i32, %arg1: i32) -> (i32, i32, i32) {
    %c0_i32 = arith.constant 0 : i32
    %c0_i32_0 = arith.constant 0 : i32
    %c0_i32_1 = arith.constant 0 : i32
    return %arg1, %c0_i32, %c0_i32_0 : i32, i32, i32
  }
  func.func @transform_11(%arg0: i32, %arg1: i32) -> (i32, i32, i32) {
    %c0_i32 = arith.constant 0 : i32
    %c0_i32_0 = arith.constant 0 : i32
    %c0_i32_1 = arith.constant 0 : i32
    return %arg1, %c0_i32, %c0_i32_0 : i32, i32, i32
  }
  func.func @transform_12(%arg0: i32, %arg1: i32) -> (i32, i32) {
    %c0_i32 = arith.constant 0 : i32
    %c0_i32_0 = arith.constant 0 : i32
    %c0_i32_1 = arith.constant 0 : i32
    return %c0_i32, %c0_i32_0 : i32, i32
  }
  func.func @transform_13(%arg0: i32, %arg1: i32) -> (i32, i32) {
    %c0_i32 = arith.constant 0 : i32
    %c0_i32_0 = arith.constant 0 : i32
    %c0_i32_1 = arith.constant 0 : i32
    return %c0_i32, %c0_i32_0 : i32, i32
  }
  func.func @transform_14(%arg0: i32, %arg1: i32) -> (i32, i32) {
    %c0_i32 = arith.constant 0 : i32
    %c0_i32_0 = arith.constant 0 : i32
    %c0_i32_1 = arith.constant 0 : i32
    return %c0_i32, %c0_i32_0 : i32, i32
  }
  func.func @transform_15(%arg0: i32, %arg1: i32) -> (i32, i32) {
    %c0_i32 = arith.constant 0 : i32
    %c0_i32_0 = arith.constant 0 : i32
    %c0_i32_1 = arith.constant 0 : i32
    return %c0_i32, %c0_i32_0 : i32, i32
  }
  func.func @transform_16(%arg0: i32, %arg1: i32) -> (i32, i32, i32) {
    %c0_i32 = arith.constant 0 : i32
    %c0_i32_0 = arith.constant 0 : i32
    %c0_i32_1 = arith.constant 0 : i32
    return %arg0, %c0_i32, %c0_i32_0 : i32, i32, i32
  }
}

</mosaic_0001>

<llo_original>
// kernel: tpu_custom_call.1
$region0: #{tpu_custom_call.1}
  #allocation0 [shape = 'u32[]', space=smem, size = 0x4, offset = 0x4, fixed_abs, tag = 'smem constant byte address 0x4 - core index']
  #allocation1 [shape = 'u32[144,128]{1,0:T(1,128)}', space=vmem, size = 0x12000, scoped, tag = 'internal scratch']
  #allocation2 [shape = 'f32[32,16]{1,0:T(8,128)}', space=vmem, size = 0x4000, scoped, tag = 'scratch operand']
  #allocation3 [shape = 'f32[32,16]{1,0:T(8,128)}', space=vmem, size = 0x4000, scoped, tag = 'scratch operand']
  #allocation4 [shape = 'f32[32,18]{1,0:T(8,128)}', space=vmem, size = 0x4000, scoped, tag = 'scratch operand']
  %s0 = inlined_call_operand.vmem [shape: f32[2,16,16], index: 0, kind: input, shape index: {}]
  %s1 = inlined_call_operand.vmem [shape: f32[2,32,16], index: 1, kind: input, shape index: {}]
  %s2 = inlined_call_operand.vmem [shape: f32[2,1,32], index: 2, kind: input, shape index: {}]
  %s3 = inlined_call_operand.vmem [shape: bf16[32,16], index: 3, kind: input, shape index: {}]
  %s4 = inlined_call_operand.vmem [shape: f32[32,1], index: 4, kind: input, shape index: {}]
  %s5 = inlined_call_operand.vmem [shape: bf16[4,32,32], index: 5, kind: input, shape index: {}]
  %s6 = inlined_call_operand.vmem [shape: bf16[4,64,32], index: 6, kind: input, shape index: {}]
  %s7 = inlined_call_operand.vmem [shape: f32[4,64,1], index: 7, kind: input, shape index: {}]
  %s8 = inlined_call_operand.vmem [shape: bf16[4,3,64,32], index: 8, kind: input, shape index: {}]
  %s9 = inlined_call_operand.vmem [shape: f32[4,64,1], index: 9, kind: input, shape index: {}]
  %s10 = inlined_call_operand.vmem [shape: bf16[4,64,32], index: 10, kind: input, shape index: {}]
  %s11 = inlined_call_operand.vmem [shape: f32[4,64,1], index: 11, kind: input, shape index: {}]
  %s12 = inlined_call_operand.vmem [shape: bf16[32,32], index: 12, kind: input, shape index: {}]
  %s13 = inlined_call_operand.vmem [shape: f32[32,1], index: 13, kind: input, shape index: {}]
  %s14 = inlined_call_operand.vmem [shape: bf16[16,32], index: 14, kind: input, shape index: {}]
  %s15 = inlined_call_operand.vmem [shape: f32[16,1], index: 15, kind: input, shape index: {}]
  %s16 = inlined_call_operand.hbm [shape: f32[2,16,16], index: 16, kind: output, shape index: {}]
  %s17 = sld [smem:[#allocation0]]
  $region105: #{tpu_custom_call.1} parent=0
    _
  %s19 = ssub.s32 1, %s17
  %s20 = scalar_select 0, %s19, %s17
  $region1: #{tpu_custom_call.1} parent=0
    #allocation5 [shape = 'u8[16384]{0}', space=vmem, size = 0x4000, scoped, tag = 'output window, operand 0']
    #allocation6 [shape = 's32[2]{0}', space=sflag, size = 0x8, scoped, tag = 'scoped memory for tpu_custom_call.1']
    %21 = vsyncpa [#allocation6], 0
    %s22 = scalar_lea.sflag [#allocation6], 1
    %23 = vsyncpa %s22, 0
    loop: start=0, step=1, limit=10
    $region2: #{tpu_custom_call.1} parent=1 // loop_pre_header
      _
    $region3: #{tpu_custom_call.1} parent=1 // loop_header
      %s25 = sphi 0, %s29
      %p26 = scmp.ge.s32.totalorder %s25, 10
      %s32 = sphi 0, %s44
      %s33 = sphi 0, %s40
      %s34 = sphi 0, %s32
      %s35 = sphi 0, %s33
      %s36 = sphi 0, %s34
      %s37 = sphi 0, %s35
      %s47 = sphi 0, %s49
      %s50 = sphi 0, %s47
      %s51 = sphi 0, %s50
      %s67 = sphi 0, %s51
      %s73 = sphi 0, %s75
      %s76 = sphi 0, %s73
      %s77 = sphi 0, %s76
      %s93 = sphi 0, %s77
      %s99 = sphi 0, %s101
      %s102 = sphi 0, %s99
      %s103 = sphi 0, %s102
      %s119 = sphi 0, %s103
      %s123 = sphi 0, %s123
      %s125 = sphi 0, %s123
      %s126 = sphi 0, %s125
      %s140 = sphi 0, %s126
      %s144 = sphi 0, %s144
      %s146 = sphi 0, %s144
      %s147 = sphi 0, %s146
      %s161 = sphi 0, %s147
      %s167 = sphi 0, %s169
      %s170 = sphi 0, %s167
      %s171 = sphi 0, %s170
      %s187 = sphi 0, %s171
      %s193 = sphi 0, %s195
      %s196 = sphi 0, %s193
      %s197 = sphi 0, %s196
      %s213 = sphi 0, %s197
      %s219 = sphi 0, %s221
      %s222 = sphi 0, %s219
      %s223 = sphi 0, %s222
      %s239 = sphi 0, %s223
      %s245 = sphi 0, %s247
      %s248 = sphi 0, %s245
      %s249 = sphi 0, %s248
      %s265 = sphi 0, %s249
      %s271 = sphi 0, %s273
      %s274 = sphi 0, %s271
      %s275 = sphi 0, %s274
      %s291 = sphi 0, %s275
      %s297 = sphi 0, %s299
      %s300 = sphi 0, %s297
      %s301 = sphi 0, %s300
      %s317 = sphi 0, %s301
      %s323 = sphi 0, %s325
      %s326 = sphi 0, %s323
      %s327 = sphi 0, %s326
      %s343 = sphi 0, %s327
      %s347 = sphi 0, %s347
      %s349 = sphi 0, %s347
      %s350 = sphi 0, %s349
      %s364 = sphi 0, %s350
      %s368 = sphi 0, %s368
      %s370 = sphi 0, %s368
      %s371 = sphi 0, %s370
      %s385 = sphi 0, %s371
      %s389 = sphi 0, %s389
      %s391 = sphi 0, %s389
      %s392 = sphi 0, %s391
      %s406 = sphi 0, %s392
      %s410 = sphi 0, %s410
      %s412 = sphi 0, %s410
      %s413 = sphi 0, %s412
      %s427 = sphi 0, %s413
      %s433 = sphi 0, %s435
      %s436 = sphi 0, %s433
      %s437 = sphi 0, %s436
      %s453 = sphi 0, %s437
    $region4: #{tpu_custom_call.1} parent=1 // loop_header_branch
      %28 = sbr.rel (%p26) target = $region8
    $region5: #{tpu_custom_call.1} parent=1 // loop_body
      %s30 = ssub.s32 %s25, 1
      %s31 = ssub.s32 %s25, 2
      %s38 = sadd.s32 1, %s33
      %p39 = scmp.ge.s32.totalorder %s38, 4
      %s40 = scalar_select %p39, 0, %s38
      %s41 = sadd.s32 1, %s32
      %s42 = scalar_select %p39, %s41, %s32
      %p43 = scmp.ge.s32.totalorder %s42, 2
      %s44 = scalar_select %p43, 0, %s42
      %s45 = ssub.s32 %s32, %s44
      %p46 = scmp.eq.s32.totalorder %s45, 0
      %s48 = sadd.s32 %s47, 1
      %s49 = scalar_select %p46, %s47, %s48
      %p52 = pneg %p46
      %p53 = scmp.eq.s32.totalorder %s25, 7
      %p54 = por %p52, %p53
      %p55 = scmp.ne.s32.totalorder %s47, %s50
      %p56 = scmp.eq.s32.totalorder %s25, 0
      %p57 = por %p55, %p56
      %p58 = scmp.ne.s32.totalorder %s47, %s50
      %p59 = scmp.eq.s32.totalorder %s30, 7
      %p60 = por %p58, %p59
      %p61 = scmp.ne.s32.totalorder %s50, %s51
      %p62 = scmp.eq.s32.totalorder %s30, 0
      %p63 = por %p61, %p62
      %p64 = scmp.ne.s32.totalorder %s50, %s51
      %p65 = scmp.eq.s32.totalorder %s31, 7
      %p66 = por %p64, %p65
      %p68 = scmp.ne.s32.totalorder %s51, %s67
      %p69 = scmp.eq.s32.totalorder %s31, 0
      %p70 = por %p68, %p69
      %s71 = ssub.s32 %s32, %s44
      %p72 = scmp.eq.s32.totalorder %s71, 0
      %s74 = sadd.s32 %s73, 1
      %s75 = scalar_select %p72, %s73, %s74
      %p78 = pneg %p72
      %p79 = scmp.eq.s32.totalorder %s25, 7
      %p80 = por %p78, %p79
      %p81 = scmp.ne.s32.totalorder %s73, %s76
      %p82 = scmp.eq.s32.totalorder %s25, 0
      %p83 = por %p81, %p82
      %p84 = scmp.ne.s32.totalorder %s73, %s76
      %p85 = scmp.eq.s32.totalorder %s30, 7
      %p86 = por %p84, %p85
      %p87 = scmp.ne.s32.totalorder %s76, %s77
      %p88 = scmp.eq.s32.totalorder %s30, 0
      %p89 = por %p87, %p88
      %p90 = scmp.ne.s32.totalorder %s76, %s77
      %p91 = scmp.eq.s32.totalorder %s31, 7
      %p92 = por %p90, %p91
      %p94 = scmp.ne.s32.totalorder %s77, %s93
      %p95 = scmp.eq.s32.totalorder %s31, 0
      %p96 = por %p94, %p95
      %s97 = ssub.s32 %s32, %s44
      %p98 = scmp.eq.s32.totalorder %s97, 0
      %s100 = sadd.s32 %s99, 1
      %s101 = scalar_select %p98, %s99, %s100
      %p104 = pneg %p98
      %p105 = scmp.eq.s32.totalorder %s25, 7
      %p106 = por %p104, %p105
      %p107 = scmp.ne.s32.totalorder %s99, %s102
      %p108 = scmp.eq.s32.totalorder %s25, 0
      %p109 = por %p107, %p108
      %p110 = scmp.ne.s32.totalorder %s99, %s102
      %p111 = scmp.eq.s32.totalorder %s30, 7
      %p112 = por %p110, %p111
      %p113 = scmp.ne.s32.totalorder %s102, %s103
      %p114 = scmp.eq.s32.totalorder %s30, 0
      %p115 = por %p113, %p114
      %p116 = scmp.ne.s32.totalorder %s102, %s103
      %p117 = scmp.eq.s32.totalorder %s31, 7
      %p118 = por %p116, %p117
      %p120 = scmp.ne.s32.totalorder %s103, %s119
      %p121 = scmp.eq.s32.totalorder %s31, 0
      %p122 = por %p120, %p121
      %s124 = sadd.s32 %s123, 1
      %p127 = scmp.eq.s32.totalorder %s25, 7
      %p128 = scmp.ne.s32.totalorder %s123, %s125
      %p129 = scmp.eq.s32.totalorder %s25, 0
      %p130 = por %p128, %p129
      %p131 = scmp.ne.s32.totalorder %s123, %s125
      %p132 = scmp.eq.s32.totalorder %s30, 7
      %p133 = por %p131, %p132
      %p134 = scmp.ne.s32.totalorder %s125, %s126
      %p135 = scmp.eq.s32.totalorder %s30, 0
      %p136 = por %p134, %p135
      %p137 = scmp.ne.s32.totalorder %s125, %s126
      %p138 = scmp.eq.s32.totalorder %s31, 7
      %p139 = por %p137, %p138
      %p141 = scmp.ne.s32.totalorder %s126, %s140
      %p142 = scmp.eq.s32.totalorder %s31, 0
      %p143 = por %p141, %p142
      %s145 = sadd.s32 %s144, 1
      %p148 = scmp.eq.s32.totalorder %s25, 7
      %p149 = scmp.ne.s32.totalorder %s144, %s146
      %p150 = scmp.eq.s32.totalorder %s25, 0
      %p151 = por %p149, %p150
      %p152 = scmp.ne.s32.totalorder %s144, %s146
      %p153 = scmp.eq.s32.totalorder %s30, 7
      %p154 = por %p152, %p153
      %p155 = scmp.ne.s32.totalorder %s146, %s147
      %p156 = scmp.eq.s32.totalorder %s30, 0
      %p157 = por %p155, %p156
      %p158 = scmp.ne.s32.totalorder %s146, %s147
      %p159 = scmp.eq.s32.totalorder %s31, 7
      %p160 = por %p158, %p159
      %p162 = scmp.ne.s32.totalorder %s147, %s161
      %p163 = scmp.eq.s32.totalorder %s31, 0
      %p164 = por %p162, %p163
      %s165 = ssub.s32 %s33, %s40
      %p166 = scmp.eq.s32.totalorder %s165, 0
      %s168 = sadd.s32 %s167, 1
      %s169 = scalar_select %p166, %s167, %s168
      %p172 = pneg %p166
      %p173 = scmp.eq.s32.totalorder %s25, 7
      %p174 = por %p172, %p173
      %p175 = scmp.ne.s32.totalorder %s167, %s170
      %p176 = scmp.eq.s32.totalorder %s25, 0
      %p177 = por %p175, %p176
      %p178 = scmp.ne.s32.totalorder %s167, %s170
      %p179 = scmp.eq.s32.totalorder %s30, 7
      %p180 = por %p178, %p179
      %p181 = scmp.ne.s32.totalorder %s170, %s171
      %p182 = scmp.eq.s32.totalorder %s30, 0
      %p183 = por %p181, %p182
      %p184 = scmp.ne.s32.totalorder %s170, %s171
      %p185 = scmp.eq.s32.totalorder %s31, 7
      %p186 = por %p184, %p185
      %p188 = scmp.ne.s32.totalorder %s171, %s187
      %p189 = scmp.eq.s32.totalorder %s31, 0
      %p190 = por %p188, %p189
      %s191 = ssub.s32 %s33, %s40
      %p192 = scmp.eq.s32.totalorder %s191, 0
      %s194 = sadd.s32 %s193, 1
      %s195 = scalar_select %p192, %s193, %s194
      %p198 = pneg %p192
      %p199 = scmp.eq.s32.totalorder %s25, 7
      %p200 = por %p198, %p199
      %p201 = scmp.ne.s32.totalorder %s193, %s196
      %p202 = scmp.eq.s32.totalorder %s25, 0
      %p203 = por %p201, %p202
      %p204 = scmp.ne.s32.totalorder %s193, %s196
      %p205 = scmp.eq.s32.totalorder %s30, 7
      %p206 = por %p204, %p205
      %p207 = scmp.ne.s32.totalorder %s196, %s197
      %p208 = scmp.eq.s32.totalorder %s30, 0
      %p209 = por %p207, %p208
      %p210 = scmp.ne.s32.totalorder %s196, %s197
      %p211 = scmp.eq.s32.totalorder %s31, 7
      %p212 = por %p210, %p211
      %p214 = scmp.ne.s32.totalorder %s197, %s213
      %p215 = scmp.eq.s32.totalorder %s31, 0
      %p216 = por %p214, %p215
      %s217 = ssub.s32 %s33, %s40
      %p218 = scmp.eq.s32.totalorder %s217, 0
      %s220 = sadd.s32 %s219, 1
      %s221 = scalar_select %p218, %s219, %s220
      %p224 = pneg %p218
      %p225 = scmp.eq.s32.totalorder %s25, 7
      %p226 = por %p224, %p225
      %p227 = scmp.ne.s32.totalorder %s219, %s222
      %p228 = scmp.eq.s32.totalorder %s25, 0
      %p229 = por %p227, %p228
      %p230 = scmp.ne.s32.totalorder %s219, %s222
      %p231 = scmp.eq.s32.totalorder %s30, 7
      %p232 = por %p230, %p231
      %p233 = scmp.ne.s32.totalorder %s222, %s223
      %p234 = scmp.eq.s32.totalorder %s30, 0
      %p235 = por %p233, %p234
      %p236 = scmp.ne.s32.totalorder %s222, %s223
      %p237 = scmp.eq.s32.totalorder %s31, 7
      %p238 = por %p236, %p237
      %p240 = scmp.ne.s32.totalorder %s223, %s239
      %p241 = scmp.eq.s32.totalorder %s31, 0
      %p242 = por %p240, %p241
      %s243 = ssub.s32 %s33, %s40
      %p244 = scmp.eq.s32.totalorder %s243, 0
      %s246 = sadd.s32 %s245, 1
      %s247 = scalar_select %p244, %s245, %s246
      %p250 = pneg %p244
      %p251 = scmp.eq.s32.totalorder %s25, 7
      %p252 = por %p250, %p251
      %p253 = scmp.ne.s32.totalorder %s245, %s248
      %p254 = scmp.eq.s32.totalorder %s25, 0
      %p255 = por %p253, %p254
      %p256 = scmp.ne.s32.totalorder %s245, %s248
      %p257 = scmp.eq.s32.totalorder %s30, 7
      %p258 = por %p256, %p257
      %p259 = scmp.ne.s32.totalorder %s248, %s249
      %p260 = scmp.eq.s32.totalorder %s30, 0
      %p261 = por %p259, %p260
      %p262 = scmp.ne.s32.totalorder %s248, %s249
      %p263 = scmp.eq.s32.totalorder %s31, 7
      %p264 = por %p262, %p263
      %p266 = scmp.ne.s32.totalorder %s249, %s265
      %p267 = scmp.eq.s32.totalorder %s31, 0
      %p268 = por %p266, %p267
      %s269 = ssub.s32 %s33, %s40
      %p270 = scmp.eq.s32.totalorder %s269, 0
      %s272 = sadd.s32 %s271, 1
      %s273 = scalar_select %p270, %s271, %s272
      %p276 = pneg %p270
      %p277 = scmp.eq.s32.totalorder %s25, 7
      %p278 = por %p276, %p277
      %p279 = scmp.ne.s32.totalorder %s271, %s274
      %p280 = scmp.eq.s32.totalorder %s25, 0
      %p281 = por %p279, %p280
      %p282 = scmp.ne.s32.totalorder %s271, %s274
      %p283 = scmp.eq.s32.totalorder %s30, 7
      %p284 = por %p282, %p283
      %p285 = scmp.ne.s32.totalorder %s274, %s275
      %p286 = scmp.eq.s32.totalorder %s30, 0
      %p287 = por %p285, %p286
      %p288 = scmp.ne.s32.totalorder %s274, %s275
      %p289 = scmp.eq.s32.totalorder %s31, 7
      %p290 = por %p288, %p289
      %p292 = scmp.ne.s32.totalorder %s275, %s291
      %p293 = scmp.eq.s32.totalorder %s31, 0
      %p294 = por %p292, %p293
      %s295 = ssub.s32 %s33, %s40
      %p296 = scmp.eq.s32.totalorder %s295, 0
      %s298 = sadd.s32 %s297, 1
      %s299 = scalar_select %p296, %s297, %s298
      %p302 = pneg %p296
      %p303 = scmp.eq.s32.totalorder %s25, 7
      %p304 = por %p302, %p303
      %p305 = scmp.ne.s32.totalorder %s297, %s300
      %p306 = scmp.eq.s32.totalorder %s25, 0
      %p307 = por %p305, %p306
      %p308 = scmp.ne.s32.totalorder %s297, %s300
      %p309 = scmp.eq.s32.totalorder %s30, 7
      %p310 = por %p308, %p309
      %p311 = scmp.ne.s32.totalorder %s300, %s301
      %p312 = scmp.eq.s32.totalorder %s30, 0
      %p313 = por %p311, %p312
      %p314 = scmp.ne.s32.totalorder %s300, %s301
      %p315 = scmp.eq.s32.totalorder %s31, 7
      %p316 = por %p314, %p315
      %p318 = scmp.ne.s32.totalorder %s301, %s317
      %p319 = scmp.eq.s32.totalorder %s31, 0
      %p320 = por %p318, %p319
      %s321 = ssub.s32 %s33, %s40
      %p322 = scmp.eq.s32.totalorder %s321, 0
      %s324 = sadd.s32 %s323, 1
      %s325 = scalar_select %p322, %s323, %s324
      %p328 = pneg %p322
      %p329 = scmp.eq.s32.totalorder %s25, 7
      %p330 = por %p328, %p329
      %p331 = scmp.ne.s32.totalorder %s323, %s326
      %p332 = scmp.eq.s32.totalorder %s25, 0
      %p333 = por %p331, %p332
      %p334 = scmp.ne.s32.totalorder %s323, %s326
      %p335 = scmp.eq.s32.totalorder %s30, 7
      %p336 = por %p334, %p335
      %p337 = scmp.ne.s32.totalorder %s326, %s327
      %p338 = scmp.eq.s32.totalorder %s30, 0
      %p339 = por %p337, %p338
      %p340 = scmp.ne.s32.totalorder %s326, %s327
      %p341 = scmp.eq.s32.totalorder %s31, 7
      %p342 = por %p340, %p341
      %p344 = scmp.ne.s32.totalorder %s327, %s343
      %p345 = scmp.eq.s32.totalorder %s31, 0
      %p346 = por %p344, %p345
      %s348 = sadd.s32 %s347, 1
      %p351 = scmp.eq.s32.totalorder %s25, 7
      %p352 = scmp.ne.s32.totalorder %s347, %s349
      %p353 = scmp.eq.s32.totalorder %s25, 0
      %p354 = por %p352, %p353
      %p355 = scmp.ne.s32.totalorder %s347, %s349
      %p356 = scmp.eq.s32.totalorder %s30, 7
      %p357 = por %p355, %p356
      %p358 = scmp.ne.s32.totalorder %s349, %s350
      %p359 = scmp.eq.s32.totalorder %s30, 0
      %p360 = por %p358, %p359
      %p361 = scmp.ne.s32.totalorder %s349, %s350
      %p362 = scmp.eq.s32.totalorder %s31, 7
      %p363 = por %p361, %p362
      %p365 = scmp.ne.s32.totalorder %s350, %s364
      %p366 = scmp.eq.s32.totalorder %s31, 0
      %p367 = por %p365, %p366
      %s369 = sadd.s32 %s368, 1
      %p372 = scmp.eq.s32.totalorder %s25, 7
      %p373 = scmp.ne.s32.totalorder %s368, %s370
      %p374 = scmp.eq.s32.totalorder %s25, 0
      %p375 = por %p373, %p374
      %p376 = scmp.ne.s32.totalorder %s368, %s370
      %p377 = scmp.eq.s32.totalorder %s30, 7
      %p378 = por %p376, %p377
      %p379 = scmp.ne.s32.totalorder %s370, %s371
      %p380 = scmp.eq.s32.totalorder %s30, 0
      %p381 = por %p379, %p380
      %p382 = scmp.ne.s32.totalorder %s370, %s371
      %p383 = scmp.eq.s32.totalorder %s31, 7
      %p384 = por %p382, %p383
      %p386 = scmp.ne.s32.totalorder %s371, %s385
      %p387 = scmp.eq.s32.totalorder %s31, 0
      %p388 = por %p386, %p387
      %s390 = sadd.s32 %s389, 1
      %p393 = scmp.eq.s32.totalorder %s25, 7
      %p394 = scmp.ne.s32.totalorder %s389, %s391
      %p395 = scmp.eq.s32.totalorder %s25, 0
      %p396 = por %p394, %p395
      %p397 = scmp.ne.s32.totalorder %s389, %s391
      %p398 = scmp.eq.s32.totalorder %s30, 7
      %p399 = por %p397, %p398
      %p400 = scmp.ne.s32.totalorder %s391, %s392
      %p401 = scmp.eq.s32.totalorder %s30, 0
      %p402 = por %p400, %p401
      %p403 = scmp.ne.s32.totalorder %s391, %s392
      %p404 = scmp.eq.s32.totalorder %s31, 7
      %p405 = por %p403, %p404
      %p407 = scmp.ne.s32.totalorder %s392, %s406
      %p408 = scmp.eq.s32.totalorder %s31, 0
      %p409 = por %p407, %p408
      %s411 = sadd.s32 %s410, 1
      %p414 = scmp.eq.s32.totalorder %s25, 7
      %p415 = scmp.ne.s32.totalorder %s410, %s412
      %p416 = scmp.eq.s32.totalorder %s25, 0
      %p417 = por %p415, %p416
      %p418 = scmp.ne.s32.totalorder %s410, %s412
      %p419 = scmp.eq.s32.totalorder %s30, 7
      %p420 = por %p418, %p419
      %p421 = scmp.ne.s32.totalorder %s412, %s413
      %p422 = scmp.eq.s32.totalorder %s30, 0
      %p423 = por %p421, %p422
      %p424 = scmp.ne.s32.totalorder %s412, %s413
      %p425 = scmp.eq.s32.totalorder %s31, 7
      %p426 = por %p424, %p425
      %p428 = scmp.ne.s32.totalorder %s413, %s427
      %p429 = scmp.eq.s32.totalorder %s31, 0
      %p430 = por %p428, %p429
      %s431 = ssub.s32 %s32, %s44
      %p432 = scmp.eq.s32.totalorder %s431, 0
      %s434 = sadd.s32 %s433, 1
      %s435 = scalar_select %p432, %s433, %s434
      %p438 = pneg %p432
      %p439 = scmp.eq.s32.totalorder %s25, 7
      %p440 = por %p438, %p439
      %p441 = scmp.ne.s32.totalorder %s433, %s436
      %p442 = scmp.eq.s32.totalorder %s25, 0
      %p443 = por %p441, %p442
      %p444 = scmp.ne.s32.totalorder %s433, %s436
      %p445 = scmp.eq.s32.totalorder %s30, 7
      %p446 = por %p444, %p445
      %p447 = scmp.ne.s32.totalorder %s436, %s437
      %p448 = scmp.eq.s32.totalorder %s30, 0
      %p449 = por %p447, %p448
      %p450 = scmp.ne.s32.totalorder %s436, %s437
      %p451 = scmp.eq.s32.totalorder %s31, 7
      %p452 = por %p450, %p451
      %p454 = scmp.ne.s32.totalorder %s437, %s453
      %p455 = scmp.eq.s32.totalorder %s31, 0
      %p456 = por %p454, %p455
      %p457 = scmp.le.s32.totalorder 1, %s25
      %p458 = scmp.lt.s32.totalorder %s25, 9
      %p459 = pnand %p457, %p458
      %p460 = pneg %p459
      // Predicated region
      $region9: #{tpu_custom_call.1} parent=5 // pred_check
        _
      $region10: #{tpu_custom_call.1} parent=5 // pred_check_branch
        %462 = sbr.rel (%p459) target = $region12
      $region11: #{tpu_custom_call.1} parent=5 // pred_region
        %s463 = ssub.s32 %s25, 1
        // Predicated region
        $region13: #{tpu_custom_call.1} parent=11 // pred_check
          %p464 = pneg %p136
        $region14: #{tpu_custom_call.1} parent=11 // pred_check_branch
          %466 = sbr.rel (%p464) target = $region16
        $region15: #{tpu_custom_call.1} parent=11 // pred_region
          _
        $region16: #{tpu_custom_call.1} parent=11 // pred_fallthru
          _
        // Predicated region
        $region17: #{tpu_custom_call.1} parent=11 // pred_check
          %p467 = pneg %p157
        $region18: #{tpu_custom_call.1} parent=11 // pred_check_branch
          %469 = sbr.rel (%p467) target = $region20
        $region19: #{tpu_custom_call.1} parent=11 // pred_region
          _
        $region20: #{tpu_custom_call.1} parent=11 // pred_fallthru
          _
        // Predicated region
        $region21: #{tpu_custom_call.1} parent=11 // pred_check
          %p470 = pneg %p360
        $region22: #{tpu_custom_call.1} parent=11 // pred_check_branch
          %472 = sbr.rel (%p470) target = $region24
        $region23: #{tpu_custom_call.1} parent=11 // pred_region
          _
        $region24: #{tpu_custom_call.1} parent=11 // pred_fallthru
          _
        // Predicated region
        $region25: #{tpu_custom_call.1} parent=11 // pred_check
          %p473 = pneg %p381
        $region26: #{tpu_custom_call.1} parent=11 // pred_check_branch
          %475 = sbr.rel (%p473) target = $region28
        $region27: #{tpu_custom_call.1} parent=11 // pred_region
          _
        $region28: #{tpu_custom_call.1} parent=11 // pred_fallthru
          _
        // Predicated region
        $region29: #{tpu_custom_call.1} parent=11 // pred_check
          %p476 = pneg %p402
        $region30: #{tpu_custom_call.1} parent=11 // pred_check_branch
          %478 = sbr.rel (%p476) target = $region32
        $region31: #{tpu_custom_call.1} parent=11 // pred_region
          _
        $region32: #{tpu_custom_call.1} parent=11 // pred_fallthru
          _
        // Predicated region
        $region33: #{tpu_custom_call.1} parent=11 // pred_check
          %p479 = pneg %p423
        $region34: #{tpu_custom_call.1} parent=11 // pred_check_branch
          %481 = sbr.rel (%p479) target = $region36
        $region35: #{tpu_custom_call.1} parent=11 // pred_region
          _
        $region36: #{tpu_custom_call.1} parent=11 // pred_fallthru
          _
      $region12: #{tpu_custom_call.1} parent=5 // pred_fallthru
        _
      %p482 = scmp.lt.s32.totalorder %s25, 8
      // Predicated region
      $region37: #{tpu_custom_call.1} parent=5 // pred_check
        %p483 = pneg %p482
      $region38: #{tpu_custom_call.1} parent=5 // pred_check_branch
        %485 = sbr.rel (%p483) target = $region40
      $region39: #{tpu_custom_call.1} parent=5 // pred_region
        // Predicated region
        $region41: #{tpu_custom_call.1} parent=39 // pred_check
          %p486 = pneg %p57
        $region42: #{tpu_custom_call.1} parent=39 // pred_check_branch
          %488 = sbr.rel (%p486) target = $region44
        $region43: #{tpu_custom_call.1} parent=39 // pred_region
          %p489 = scmp.lt.s32.totalorder %s32, 1
          %s490 = scalar_select %p489, %s32, 1
          %s491 = smul.addr %s490, 2
          %s492 = smul.addr %s491, 8
          %s493 = scalar_lea.vmem %s0, %s492
        $region44: #{tpu_custom_call.1} parent=39 // pred_fallthru
          _
        // Predicated region
        $region45: #{tpu_custom_call.1} parent=39 // pred_check
          %p494 = pneg %p83
        $region46: #{tpu_custom_call.1} parent=39 // pred_check_branch
          %496 = sbr.rel (%p494) target = $region48
        $region47: #{tpu_custom_call.1} parent=39 // pred_region
          %p497 = scmp.lt.s32.totalorder %s32, 1
          %s498 = scalar_select %p497, %s32, 1
          %s499 = smul.addr %s498, 4
          %s500 = smul.addr %s499, 8
          %s501 = scalar_lea.vmem %s1, %s500
        $region48: #{tpu_custom_call.1} parent=39 // pred_fallthru
          _
        // Predicated region
        $region49: #{tpu_custom_call.1} parent=39 // pred_check
          %p502 = pneg %p109
        $region50: #{tpu_custom_call.1} parent=39 // pred_check_branch
          %504 = sbr.rel (%p502) target = $region52
        $region51: #{tpu_custom_call.1} parent=39 // pred_region
          %p505 = scmp.lt.s32.totalorder %s32, 1
          %s506 = scalar_select %p505, %s32, 1
          %s507 = scalar_lea.vmem %s2, %s506
        $region52: #{tpu_custom_call.1} parent=39 // pred_fallthru
          _
        // Predicated region
        $region53: #{tpu_custom_call.1} parent=39 // pred_check
          %p508 = pneg %p177
        $region54: #{tpu_custom_call.1} parent=39 // pred_check_branch
          %510 = sbr.rel (%p508) target = $region56
        $region55: #{tpu_custom_call.1} parent=39 // pred_region
          %p511 = scmp.lt.s32.totalorder %s33, 3
          %s512 = scalar_select %p511, %s33, 3
          %s513 = smul.addr %s512, 4
          %s514 = smul.addr %s513, 4
          %s515 = scalar_lea.vmem %s5, %s514
        $region56: #{tpu_custom_call.1} parent=39 // pred_fallthru
          _
        // Predicated region
        $region57: #{tpu_custom_call.1} parent=39 // pred_check
          %p516 = pneg %p203
        $region58: #{tpu_custom_call.1} parent=39 // pred_check_branch
          %518 = sbr.rel (%p516) target = $region60
        $region59: #{tpu_custom_call.1} parent=39 // pred_region
          %p519 = scmp.lt.s32.totalorder %s33, 3
          %s520 = scalar_select %p519, %s33, 3
          %s521 = smul.addr %s520, 8
          %s522 = smul.addr %s521, 4
          %s523 = scalar_lea.vmem %s6, %s522
        $region60: #{tpu_custom_call.1} parent=39 // pred_fallthru
          _
        // Predicated region
        $region61: #{tpu_custom_call.1} parent=39 // pred_check
          %p524 = pneg %p229
        $region62: #{tpu_custom_call.1} parent=39 // pred_check_branch
          %526 = sbr.rel (%p524) target = $region64
        $region63: #{tpu_custom_call.1} parent=39 // pred_region
          %p527 = scmp.lt.s32.totalorder %s33, 3
          %s528 = scalar_select %p527, %s33, 3
          %s529 = smul.addr %s528, 8
          %s530 = smul.addr %s529, 8
          %s531 = scalar_lea.vmem %s7, %s530
        $region64: #{tpu_custom_call.1} parent=39 // pred_fallthru
          _
        // Predicated region
        $region65: #{tpu_custom_call.1} parent=39 // pred_check
          %p532 = pneg %p255
        $region66: #{tpu_custom_call.1} parent=39 // pred_check_branch
          %534 = sbr.rel (%p532) target = $region68
        $region67: #{tpu_custom_call.1} parent=39 // pred_region
          %p535 = scmp.lt.s32.totalorder %s33, 3
          %s536 = scalar_select %p535, %s33, 3
          %s537 = smul.addr %s536, 24
          %s538 = smul.addr %s537, 4
          %s539 = scalar_lea.vmem %s8, %s538
        $region68: #{tpu_custom_call.1} parent=39 // pred_fallthru
          _
        // Predicated region
        $region69: #{tpu_custom_call.1} parent=39 // pred_check
          %p540 = pneg %p281
        $region70: #{tpu_custom_call.1} parent=39 // pred_check_branch
          %542 = sbr.rel (%p540) target = $region72
        $region71: #{tpu_custom_call.1} parent=39 // pred_region
          %p543 = scmp.lt.s32.totalorder %s33, 3
          %s544 = scalar_select %p543, %s33, 3
          %s545 = smul.addr %s544, 8
          %s546 = smul.addr %s545, 8
          %s547 = scalar_lea.vmem %s9, %s546
        $region72: #{tpu_custom_call.1} parent=39 // pred_fallthru
          _
        // Predicated region
        $region73: #{tpu_custom_call.1} parent=39 // pred_check
          %p548 = pneg %p307
        $region74: #{tpu_custom_call.1} parent=39 // pred_check_branch
          %550 = sbr.rel (%p548) target = $region76
        $region75: #{tpu_custom_call.1} parent=39 // pred_region
          %p551 = scmp.lt.s32.totalorder %s33, 3
          %s552 = scalar_select %p551, %s33, 3
          %s553 = smul.addr %s552, 8
          %s554 = smul.addr %s553, 4
          %s555 = scalar_lea.vmem %s10, %s554
        $region76: #{tpu_custom_call.1} parent=39 // pred_fallthru
          _
        // Predicated region
        $region77: #{tpu_custom_call.1} parent=39 // pred_check
          %p556 = pneg %p333
        $region78: #{tpu_custom_call.1} parent=39 // pred_check_branch
          %558 = sbr.rel (%p556) target = $region80
        $region79: #{tpu_custom_call.1} parent=39 // pred_region
          %p559 = scmp.lt.s32.totalorder %s33, 3
          %s560 = scalar_select %p559, %s33, 3
          %s561 = smul.addr %s560, 8
          %s562 = smul.addr %s561, 8
          %s563 = scalar_lea.vmem %s11, %s562
        $region80: #{tpu_custom_call.1} parent=39 // pred_fallthru
          _
      $region40: #{tpu_custom_call.1} parent=5 // pred_fallthru
        _
      %p564 = scmp.le.s32.totalorder 1, %s25
      %p565 = scmp.lt.s32.totalorder %s25, 9
      %p566 = pnand %p564, %p565
      %p567 = pneg %p566
      // Predicated region
      $region81: #{tpu_custom_call.1} parent=5 // pred_check
        _
      $region82: #{tpu_custom_call.1} parent=5 // pred_check_branch
        %569 = sbr.rel (%p566) target = $region84
      $region83: #{tpu_custom_call.1} parent=5 // pred_region
        %s570 = ssub.s32 %s25, 1
        %p571 = scmp.lt.s32.totalorder %s34, 1
        %s572 = scalar_select %p571, %s34, 1
        %s573 = smul.addr %s572, 2
        %s574 = smul.addr %s573, 8
        %s575 = scalar_lea.vmem %s0, %s574
        %p576 = pneg %p63
        %p577 = pneg %p60
        %p578 = scmp.lt.s32.totalorder %s34, 1
        %s579 = scalar_select %p578, %s34, 1
        %s580 = smul.addr %s579, 4
        %s581 = smul.addr %s580, 8
        %s582 = scalar_lea.vmem %s1, %s581
        %p583 = pneg %p89
        %p584 = pneg %p86
        %p585 = scmp.lt.s32.totalorder %s34, 1
        %s586 = scalar_select %p585, %s34, 1
        %s587 = scalar_lea.vmem %s2, %s586
        %p588 = pneg %p115
        %p589 = pneg %p112
        %p590 = pneg %p136
        %p591 = pneg %p133
        %p592 = pneg %p157
        %p593 = pneg %p154
        %p594 = scmp.lt.s32.totalorder %s35, 3
        %s595 = scalar_select %p594, %s35, 3
        %s596 = smul.addr %s595, 4
        %s597 = smul.addr %s596, 4
        %s598 = scalar_lea.vmem %s5, %s597
        %p599 = pneg %p183
        %p600 = pneg %p180
        %p601 = scmp.lt.s32.totalorder %s35, 3
        %s602 = scalar_select %p601, %s35, 3
        %s603 = smul.addr %s602, 8
        %s604 = smul.addr %s603, 4
        %s605 = scalar_lea.vmem %s6, %s604
        %p606 = pneg %p209
        %p607 = pneg %p206
        %p608 = scmp.lt.s32.totalorder %s35, 3
        %s609 = scalar_select %p608, %s35, 3
        %s610 = smul.addr %s609, 8
        %s611 = smul.addr %s610, 8
        %s612 = scalar_lea.vmem %s7, %s611
        %p613 = pneg %p235
        %p614 = pneg %p232
        %p615 = scmp.lt.s32.totalorder %s35, 3
        %s616 = scalar_select %p615, %s35, 3
        %s617 = smul.addr %s616, 24
        %s618 = smul.addr %s617, 4
        %s619 = scalar_lea.vmem %s8, %s618
        %p620 = pneg %p261
        %p621 = pneg %p258
        %p622 = scmp.lt.s32.totalorder %s35, 3
        %s623 = scalar_select %p622, %s35, 3
        %s624 = smul.addr %s623, 8
        %s625 = smul.addr %s624, 8
        %s626 = scalar_lea.vmem %s9, %s625
        %p627 = pneg %p287
        %p628 = pneg %p284
        %p629 = scmp.lt.s32.totalorder %s35, 3
        %s630 = scalar_select %p629, %s35, 3
        %s631 = smul.addr %s630, 8
        %s632 = smul.addr %s631, 4
        %s633 = scalar_lea.vmem %s10, %s632
        %p634 = pneg %p313
        %p635 = pneg %p310
        %p636 = scmp.lt.s32.totalorder %s35, 3
        %s637 = scalar_select %p636, %s35, 3
        %s638 = smul.addr %s637, 8
        %s639 = smul.addr %s638, 8
        %s640 = scalar_lea.vmem %s11, %s639
        %p641 = pneg %p339
        %p642 = pneg %p336
        %p643 = pneg %p360
        %p644 = pneg %p357
        %p645 = pneg %p381
        %p646 = pneg %p378
        %p647 = pneg %p402
        %p648 = pneg %p399
        %p649 = pneg %p423
        %p650 = pneg %p420
        %p651 = pneg %p449
        %p652 = pneg %p446
        %s653 = sand.u32 %s436, 1
        %s654 = scalar_lea.sflag [#allocation6], %s653
        %s655 = sand.u32 %s436, 1
        %s656 = smul.addr %s655, 16
        %s657 = scalar_lea.vmem [#allocation5], %s656
        %p658 = scmp.lt.s32.totalorder %s34, 1
        %s659 = scalar_select %p658, %s34, 1
        %s660 = smul.addr %s659, 2
        %s661 = smul.addr %s660, 8
        %s662 = scalar_lea.vmem %s0, %s661
        %p663 = scmp.lt.s32.totalorder %s34, 1
        %s664 = scalar_select %p663, %s34, 1
        %s665 = smul.addr %s664, 4
        %s666 = smul.addr %s665, 8
        %s667 = scalar_lea.vmem %s1, %s666
        %p668 = scmp.lt.s32.totalorder %s34, 1
        %s669 = scalar_select %p668, %s34, 1
        %s670 = scalar_lea.vmem %s2, %s669
        %p671 = scmp.lt.s32.totalorder %s35, 3
        %s672 = scalar_select %p671, %s35, 3
        %s673 = smul.addr %s672, 4
        %s674 = smul.addr %s673, 4
        %s675 = scalar_lea.vmem %s5, %s674
        %p676 = scmp.lt.s32.totalorder %s35, 3
        %s677 = scalar_select %p676, %s35, 3
        %s678 = smul.addr %s677, 8
        %s679 = smul.addr %s678, 4
        %s680 = scalar_lea.vmem %s6, %s679
        %p681 = scmp.lt.s32.totalorder %s35, 3
        %s682 = scalar_select %p681, %s35, 3
        %s683 = smul.addr %s682, 8
        %s684 = smul.addr %s683, 8
        %s685 = scalar_lea.vmem %s7, %s684
        %p686 = scmp.lt.s32.totalorder %s35, 3
        %s687 = scalar_select %p686, %s35, 3
        %s688 = smul.addr %s687, 24
        %s689 = smul.addr %s688, 4
        %s690 = scalar_lea.vmem %s8, %s689
        %p691 = scmp.lt.s32.totalorder %s35, 3
        %s692 = scalar_select %p691, %s35, 3
        %s693 = smul.addr %s692, 8
        %s694 = smul.addr %s693, 8
        %s695 = scalar_lea.vmem %s9, %s694
        %p696 = scmp.lt.s32.totalorder %s35, 3
        %s697 = scalar_select %p696, %s35, 3
        %s698 = smul.addr %s697, 8
        %s699 = smul.addr %s698, 4
        %s700 = scalar_lea.vmem %s10, %s699
        %p701 = scmp.lt.s32.totalorder %s35, 3
        %s702 = scalar_select %p701, %s35, 3
        %s703 = smul.addr %s702, 8
        %s704 = smul.addr %s703, 8
        %s705 = scalar_lea.vmem %s11, %s704
        %p707 = scmp.eq.s32.totalorder %s35, 0
        // Predicated region
        $region85: #{tpu_custom_call.1} parent=83 // pred_check
          %p708 = pneg %p707
        $region86: #{tpu_custom_call.1} parent=83 // pred_check_branch
          %710 = sbr.rel (%p708) target = $region88
        $region87: #{tpu_custom_call.1} parent=83 // pred_region
          %v711 = vld [vmem:[%s3] sm:$0xf]
          %v712 = vld [vmem:[%s3 + $0x4] sm:$0xf]
          %v713 = vld [vmem:[%s3 + $0x8] sm:$0xf]
          %v714 = vld [vmem:[%s3 + $0xc] sm:$0xf]
          %v715 = vld [vmem:[%s662] sm:$0xff]
          %v716 = vld [vmem:[%s662 + $0x8] sm:$0xff]
          %v717 = vpack.c.bf16 %v716, %v715
          %v718 = vld [vmem:[%s4] sm:$0xff]
          %v719 = vld [vmem:[%s4 + $0x8] sm:$0xff]
          %v720 = vld [vmem:[%s4 + $0x10] sm:$0xff]
          %v721 = vld [vmem:[%s4 + $0x18] sm:$0xff]
          %723 = vset.pattern.permute.xlu0 0
          %724 = vperm.xlu0 %723, %v718
          %v725 = vpop.permute.xlu0 %724
          %728 = vset.pattern.permute.xlu0 0
          %729 = vperm.xlu0 %728, %v719
          %v730 = vpop.permute.xlu0 %729
          %733 = vset.pattern.permute.xlu0 0
          %734 = vperm.xlu0 %733, %v720
          %v735 = vpop.permute.xlu0 %734
          %738 = vset.pattern.permute.xlu0 0
          %739 = vperm.xlu0 %738, %v721
          %v740 = vpop.permute.xlu0 %739
          %v746 = vunpack.c.l.b16 %v711
          %v747 = vunpack.c.l.b16 %v712
          %v748 = vunpack.c.l.b16 %v713
          %v749 = vunpack.c.l.b16 %v714
          %v750 = vpack.c.b16 %v747, %v746
          %v751 = vpack.c.b16 %v749, %v748
          %vm752 = vcmask 130048
          %v754 = vsel %vm752, %v750, 0
          %v757 = vsel %vm752, %v751, 0
          %759 = vmatprep.subr.bf16.mxu0 0
          %760 = vmatpush1.bf16.msra.mxu0 %v717
          %761 = vmatprep.subr.bf16.mxu0 0
          %762 = vmatpush1.bf16.msra.mxu0 0
          %763 = vmatprep.subr.bf16.mxu0 0
          %764 = vmatpush1.bf16.msra.mxu0 0
          %765 = vmatprep.subr.bf16.mxu0 0
          %766 = vmatpush1.bf16.msra.mxu0 0
          %767 = vmatprep.subr.bf16.mxu0 0
          %768 = vmatpush1.bf16.msra.mxu0 0
          %769 = vmatprep.subr.bf16.mxu0 0
          %770 = vmatpush1.bf16.msra.mxu0 0
          %771 = vmatprep.subr.bf16.mxu0 0
          %772 = vmatpush1.bf16.msra.mxu0 0
          %773 = vmatprep.subr.bf16.mxu0 0
          %774 = vmatpush1.bf16.msra.mxu0 0
          %775 = vmatprep.subr.bf16.mxu0 0
          %776 = vmatpush1.bf16.msra.mxu0 0
          %777 = vmatprep.subr.bf16.mxu0 0
          %778 = vmatpush1.bf16.msra.mxu0 0
          %779 = vmatprep.subr.bf16.mxu0 0
          %780 = vmatpush1.bf16.msra.mxu0 0
          %781 = vmatprep.subr.bf16.mxu0 0
          %782 = vmatpush1.bf16.msra.mxu0 0
          %783 = vmatprep.subr.bf16.mxu0 0
          %784 = vmatpush1.bf16.msra.mxu0 0
          %785 = vmatprep.subr.bf16.mxu0 0
          %786 = vmatpush1.bf16.msra.mxu0 0
          %787 = vmatprep.subr.bf16.mxu0 0
          %788 = vmatpush1.bf16.msra.mxu0 0
          %789 = vmatprep.subr.bf16.mxu0 0
          %790 = vmatpush1.bf16.msra.mxu0 0
          %791 = vmatprep.mubr.bf16.mxu0 0
          %792 = vmatmul.mubr.bf16.gmra.mrb[0].mxu0 %v754
          %v793 = vpop.f32.mrb[0].mxu0
          %v794 = vadd.f32 %v725, %v793
          %v795 = vpop.f32.mrb[0].mxu0
          %v796 = vpop.f32.mrb[0].mxu0
          %v797 = vadd.f32 %v730, %v796
          %v798 = vpop.f32.mrb[0].mxu0
          %799 = vmatprep.mubr.bf16.mxu0 0
          %800 = vmatmul.mubr.bf16.gmra.mrb[0].mxu0 %v757
          %v801 = vpop.f32.mrb[0].mxu0
          %v802 = vadd.f32 %v735, %v801
          %v803 = vpop.f32.mrb[0].mxu0
          %v804 = vpop.f32.mrb[0].mxu0
          %v805 = vadd.f32 %v740, %v804
          %v806 = vpop.f32.mrb[0].mxu0
          %807 = vdwg.mxu0
          %v808 = vmax.f32 %v794, 0.0
          %v809 = vmax.f32 %v797, 0.0
          %v810 = vmax.f32 %v802, 0.0
          %v811 = vmax.f32 %v805, 0.0
          %812 = vst.msk [vmem:[#allocation2] sm:$0xff] %vm752, %v808
          %813 = vst.msk [vmem:[#allocation2 + $0x8] sm:$0xff] %vm752, %v809
          %814 = vst.msk [vmem:[#allocation2 + $0x10] sm:$0xff] %vm752, %v810
          %815 = vst.msk [vmem:[#allocation2 + $0x18] sm:$0xff] %vm752, %v811
          %816 = vst.msk [vmem:[#allocation3] sm:$0xff] %vm752, 0.0
          %817 = vst.msk [vmem:[#allocation3 + $0x8] sm:$0xff] %vm752, 0.0
          %818 = vst.msk [vmem:[#allocation3 + $0x10] sm:$0xff] %vm752, 0.0
          %819 = vst.msk [vmem:[#allocation3 + $0x18] sm:$0xff] %vm752, 0.0
          %vm820 = vcmask 146432
          %821 = vst.msk [vmem:[#allocation4] sm:$0xff] %vm820, 0.0
          %822 = vst.msk [vmem:[#allocation4 + $0x8] sm:$0xff] %vm820, 0.0
          %823 = vst.msk [vmem:[#allocation4 + $0x10] sm:$0xff] %vm820, 0.0
          %824 = vst.msk [vmem:[#allocation4 + $0x18] sm:$0xff] %vm820, 0.0
        $region88: #{tpu_custom_call.1} parent=83 // pred_fallthru
          _
        %v825 = vld [vmem:[#allocation2] sm:$0xff]
        %v826 = vld [vmem:[#allocation2 + $0x8] sm:$0xff]
        %v827 = vld [vmem:[#allocation2 + $0x10] sm:$0xff]
        %v828 = vld [vmem:[#allocation2 + $0x18] sm:$0xff]
        %v829 = vld [vmem:[%s670] sm:$0x1]
        %v830 = vld [vmem:[%s675] sm:$0xf]
        %v831 = vld [vmem:[%s675 + $0x4] sm:$0xf]
        %v832 = vld [vmem:[%s675 + $0x8] sm:$0xf]
        %v833 = vld [vmem:[%s675 + $0xc] sm:$0xf]
        %v834 = vunpack.c.l.bf16 %v830
        %v835 = vunpack.c.l.bf16 %v831
        %v836 = vunpack.c.l.bf16 %v832
        %v837 = vunpack.c.l.bf16 %v833
        %v839 = vlaneseq
        %v840 = vshrl.u32 %v839, 7
        %v841 = vsub.s32 0, %v840
        %v842 = vrot.slane %v829, %v841
        %v844 = vmul.f32 %v834, %v842
        %v845 = vmul.f32 %v835, %v842
        %v846 = vmul.f32 %v836, %v842
        %v847 = vmul.f32 %v837, %v842
        %vm848 = vcmask 261120
        %v849 = vsel %vm848, %v844, 0.0
        %850 = vadd.xlane.f32.xlu0 %v849
        %v851 = vpop.xlane.xlu0 %850
        %v852 = vsel %vm848, %v845, 0.0
        %853 = vadd.xlane.f32.xlu0 %v852
        %v854 = vpop.xlane.xlu0 %853
        %v855 = vsel %vm848, %v846, 0.0
        %856 = vadd.xlane.f32.xlu0 %v855
        %v857 = vpop.xlane.xlu0 %856
        %v858 = vsel %vm848, %v847, 0.0
        %859 = vadd.xlane.f32.xlu0 %v858
        %v860 = vpop.xlane.xlu0 %859
        %v861 = vld [vmem:[%s680] sm:$0xf]
        %v862 = vld [vmem:[%s680 + $0x4] sm:$0xf]
        %v863 = vld [vmem:[%s680 + $0x8] sm:$0xf]
        %v864 = vld [vmem:[%s680 + $0xc] sm:$0xf]
        %v865 = vld [vmem:[%s680 + $0x10] sm:$0xf]
        %v866 = vld [vmem:[%s680 + $0x14] sm:$0xf]
        %v867 = vld [vmem:[%s680 + $0x18] sm:$0xf]
        %v868 = vld [vmem:[%s680 + $0x1c] sm:$0xf]
        %v869 = vld [vmem:[%s667] sm:$0xff]
        %v870 = vld [vmem:[%s667 + $0x8] sm:$0xff]
        %v871 = vld [vmem:[%s667 + $0x10] sm:$0xff]
        %v872 = vld [vmem:[%s667 + $0x18] sm:$0xff]
        %v873 = vpack.c.bf16 %v870, %v869
        %v874 = vpack.c.bf16 %v872, %v871
        %v875 = vld [vmem:[%s685] sm:$0xff]
        %v876 = vld [vmem:[%s685 + $0x8] sm:$0xff]
        %v877 = vld [vmem:[%s685 + $0x10] sm:$0xff]
        %v878 = vld [vmem:[%s685 + $0x18] sm:$0xff]
        %v879 = vld [vmem:[%s685 + $0x20] sm:$0xff]
        %v880 = vld [vmem:[%s685 + $0x28] sm:$0xff]
        %v881 = vld [vmem:[%s685 + $0x30] sm:$0xff]
        %v882 = vld [vmem:[%s685 + $0x38] sm:$0xff]
        %884 = vset.pattern.permute.xlu0 0
        %885 = vperm.xlu0 %884, %v875
        %v886 = vpop.permute.xlu0 %885
        %889 = vset.pattern.permute.xlu0 0
        %890 = vperm.xlu0 %889, %v876
        %v891 = vpop.permute.xlu0 %890
        %894 = vset.pattern.permute.xlu0 0
        %895 = vperm.xlu0 %894, %v877
        %v896 = vpop.permute.xlu0 %895
        %899 = vset.pattern.permute.xlu0 0
        %900 = vperm.xlu0 %899, %v878
        %v901 = vpop.permute.xlu0 %900
        %904 = vset.pattern.permute.xlu0 0
        %905 = vperm.xlu0 %904, %v879
        %v906 = vpop.permute.xlu0 %905
        %909 = vset.pattern.permute.xlu0 0
        %910 = vperm.xlu0 %909, %v880
        %v911 = vpop.permute.xlu0 %910
        %914 = vset.pattern.permute.xlu0 0
        %915 = vperm.xlu0 %914, %v881
        %v916 = vpop.permute.xlu0 %915
        %919 = vset.pattern.permute.xlu0 0
        %920 = vperm.xlu0 %919, %v882
        %v921 = vpop.permute.xlu0 %920
        %v931 = vunpack.c.l.b16 %v861
        %v932 = vunpack.c.l.b16 %v862
        %v933 = vunpack.c.l.b16 %v863
        %v934 = vunpack.c.l.b16 %v864
        %v935 = vunpack.c.l.b16 %v865
        %v936 = vunpack.c.l.b16 %v866
        %v937 = vunpack.c.l.b16 %v867
        %v938 = vunpack.c.l.b16 %v868
        %v939 = vpack.c.b16 %v932, %v931
        %v940 = vpack.c.b16 %v934, %v933
        %v941 = vpack.c.b16 %v936, %v935
        %v942 = vpack.c.b16 %v938, %v937
        %v944 = vsel %vm848, %v939, 0
        %v947 = vsel %vm848, %v940, 0
        %v950 = vsel %vm848, %v941, 0
        %v953 = vsel %vm848, %v942, 0
        %955 = vmatprep.subr.bf16.mxu0 0
        %956 = vmatpush1.bf16.msra.mxu0 %v873
        %957 = vmatprep.subr.bf16.mxu0 0
        %958 = vmatpush1.bf16.msra.mxu0 %v874
        %959 = vmatprep.subr.bf16.mxu0 0
        %960 = vmatpush1.bf16.msra.mxu0 0
        %961 = vmatprep.subr.bf16.mxu0 0
        %962 = vmatpush1.bf16.msra.mxu0 0
        %963 = vmatprep.subr.bf16.mxu0 0
        %964 = vmatpush1.bf16.msra.mxu0 0
        %965 = vmatprep.subr.bf16.mxu0 0
        %966 = vmatpush1.bf16.msra.mxu0 0
        %967 = vmatprep.subr.bf16.mxu0 0
        %968 = vmatpush1.bf16.msra.mxu0 0
        %969 = vmatprep.subr.bf16.mxu0 0
        %970 = vmatpush1.bf16.msra.mxu0 0
        %971 = vmatprep.subr.bf16.mxu0 0
        %972 = vmatpush1.bf16.msra.mxu0 0
        %973 = vmatprep.subr.bf16.mxu0 0
        %974 = vmatpush1.bf16.msra.mxu0 0
        %975 = vmatprep.subr.bf16.mxu0 0
        %976 = vmatpush1.bf16.msra.mxu0 0
        %977 = vmatprep.subr.bf16.mxu0 0
        %978 = vmatpush1.bf16.msra.mxu0 0
        %979 = vmatprep.subr.bf16.mxu0 0
        %980 = vmatpush1.bf16.msra.mxu0 0
        %981 = vmatprep.subr.bf16.mxu0 0
        %982 = vmatpush1.bf16.msra.mxu0 0
        %983 = vmatprep.subr.bf16.mxu0 0
        %984 = vmatpush1.bf16.msra.mxu0 0
        %985 = vmatprep.subr.bf16.mxu0 0
        %986 = vmatpush1.bf16.msra.mxu0 0
        %987 = vmatprep.mubr.bf16.mxu0 0
        %988 = vmatmul.mubr.bf16.gmra.mrb[0].mxu0 %v944
        %v989 = vpop.f32.mrb[0].mxu0
        %v990 = vadd.f32 %v886, %v989
        %v991 = vpop.f32.mrb[0].mxu0
        %v992 = vpop.f32.mrb[0].mxu0
        %v993 = vadd.f32 %v891, %v992
        %v994 = vpop.f32.mrb[0].mxu0
        %995 = vmatprep.mubr.bf16.mxu0 0
        %996 = vmatmul.mubr.bf16.gmra.mrb[0].mxu0 %v947
        %v997 = vpop.f32.mrb[0].mxu0
        %v998 = vadd.f32 %v896, %v997
        %v999 = vpop.f32.mrb[0].mxu0
        %v1000 = vpop.f32.mrb[0].mxu0
        %v1001 = vadd.f32 %v901, %v1000
        %v1002 = vpop.f32.mrb[0].mxu0
        %1003 = vmatprep.mubr.bf16.mxu0 0
        %1004 = vmatmul.mubr.bf16.gmra.mrb[0].mxu0 %v950
        %v1005 = vpop.f32.mrb[0].mxu0
        %v1006 = vadd.f32 %v906, %v1005
        %v1007 = vpop.f32.mrb[0].mxu0
        %v1008 = vpop.f32.mrb[0].mxu0
        %v1009 = vadd.f32 %v911, %v1008
        %v1010 = vpop.f32.mrb[0].mxu0
        %1011 = vmatprep.mubr.bf16.mxu0 0
        %1012 = vmatmul.mubr.bf16.gmra.mrb[0].mxu0 %v953
        %v1013 = vpop.f32.mrb[0].mxu0
        %v1014 = vadd.f32 %v916, %v1013
        %v1015 = vpop.f32.mrb[0].mxu0
        %v1016 = vpop.f32.mrb[0].mxu0
        %v1017 = vadd.f32 %v921, %v1016
        %v1018 = vpop.f32.mrb[0].mxu0
        %1019 = vdwg.mxu0
        %v1020 = vadd.f32 %v825, %v851
        %v1021 = vadd.f32 %v826, %v854
        %v1022 = vadd.f32 %v827, %v857
        %v1023 = vadd.f32 %v828, %v860
        %1028 = vrot.lane.b32.xlu0 %v1020, 1
        %v1029 = vpop.permute.xlu0 %1028
        %1030 = vrot.lane.b32.xlu0 %v1021, 1
        %v1031 = vpop.permute.xlu0 %1030
        %1032 = vrot.lane.b32.xlu0 %v1022, 1
        %v1033 = vpop.permute.xlu0 %1032
        %1034 = vrot.lane.b32.xlu0 %v1023, 1
        %v1035 = vpop.permute.xlu0 %1034
        %vm1040 = vcmask 138248
        %1041 = vst.msk [vmem:[#allocation4] sm:$0xff] %vm1040, %v1029
        %1042 = vst.msk [vmem:[#allocation4 + $0x8] sm:$0xff] %vm1040, %v1031
        %1043 = vst.msk [vmem:[#allocation4 + $0x10] sm:$0xff] %vm1040, %v1033
        %1044 = vst.msk [vmem:[#allocation4 + $0x18] sm:$0xff] %vm1040, %v1035
        %v1045 = vld [vmem:[%s695] sm:$0xff]
        %v1046 = vld [vmem:[%s695 + $0x8] sm:$0xff]
        %v1047 = vld [vmem:[%s695 + $0x10] sm:$0xff]
        %v1048 = vld [vmem:[%s695 + $0x18] sm:$0xff]
        %v1049 = vld [vmem:[%s695 + $0x20] sm:$0xff]
        %v1050 = vld [vmem:[%s695 + $0x28] sm:$0xff]
        %v1051 = vld [vmem:[%s695 + $0x30] sm:$0xff]
        %v1052 = vld [vmem:[%s695 + $0x38] sm:$0xff]
        %1054 = vset.pattern.permute.xlu0 0
        %1055 = vperm.xlu0 %1054, %v1045
        %v1056 = vpop.permute.xlu0 %1055
        %1059 = vset.pattern.permute.xlu0 0
        %1060 = vperm.xlu0 %1059, %v1046
        %v1061 = vpop.permute.xlu0 %1060
        %1064 = vset.pattern.permute.xlu0 0
        %1065 = vperm.xlu0 %1064, %v1047
        %v1066 = vpop.permute.xlu0 %1065
        %1069 = vset.pattern.permute.xlu0 0
        %1070 = vperm.xlu0 %1069, %v1048
        %v1071 = vpop.permute.xlu0 %1070
        %1074 = vset.pattern.permute.xlu0 0
        %1075 = vperm.xlu0 %1074, %v1049
        %v1076 = vpop.permute.xlu0 %1075
        %1079 = vset.pattern.permute.xlu0 0
        %1080 = vperm.xlu0 %1079, %v1050
        %v1081 = vpop.permute.xlu0 %1080
        %1084 = vset.pattern.permute.xlu0 0
        %1085 = vperm.xlu0 %1084, %v1051
        %v1086 = vpop.permute.xlu0 %1085
        %1089 = vset.pattern.permute.xlu0 0
        %1090 = vperm.xlu0 %1089, %v1052
        %v1091 = vpop.permute.xlu0 %1090
        %v1093 = vadd.f32 %v990, %v1056
        %v1094 = vadd.f32 %v993, %v1061
        %v1095 = vadd.f32 %v998, %v1066
        %v1096 = vadd.f32 %v1001, %v1071
        %v1097 = vadd.f32 %v1006, %v1076
        %v1098 = vadd.f32 %v1009, %v1081
        %v1099 = vadd.f32 %v1014, %v1086
        %v1100 = vadd.f32 %v1017, %v1091
        %v1101 = vld [vmem:[%s690] sm:$0xf]
        %v1102 = vld [vmem:[%s690 + $0x4] sm:$0xf]
        %v1103 = vld [vmem:[%s690 + $0x8] sm:$0xf]
        %v1104 = vld [vmem:[%s690 + $0xc] sm:$0xf]
        %v1105 = vld [vmem:[%s690 + $0x10] sm:$0xf]
        %v1106 = vld [vmem:[%s690 + $0x14] sm:$0xf]
        %v1107 = vld [vmem:[%s690 + $0x18] sm:$0xf]
        %v1108 = vld [vmem:[%s690 + $0x1c] sm:$0xf]
        %v1109 = vld [vmem:[#allocation4] sm:$0xff]
        %v1110 = vld [vmem:[#allocation4 + $0x8] sm:$0xff]
        %v1111 = vld [vmem:[#allocation4 + $0x10] sm:$0xff]
        %v1112 = vld [vmem:[#allocation4 + $0x18] sm:$0xff]
        %v1113 = vpack.c.bf16 %v1110, %v1109
        %v1114 = vpack.c.bf16 %v1112, %v1111
        %v1123 = vunpack.c.l.b16 %v1101
        %v1124 = vunpack.c.l.b16 %v1102
        %v1125 = vunpack.c.l.b16 %v1103
        %v1126 = vunpack.c.l.b16 %v1104
        %v1127 = vunpack.c.l.b16 %v1105
        %v1128 = vunpack.c.l.b16 %v1106
        %v1129 = vunpack.c.l.b16 %v1107
        %v1130 = vunpack.c.l.b16 %v1108
        %v1131 = vpack.c.b16 %v1124, %v1123
        %v1132 = vpack.c.b16 %v1126, %v1125
        %v1133 = vpack.c.b16 %v1128, %v1127
        %v1134 = vpack.c.b16 %v1130, %v1129
        %v1136 = vsel %vm848, %v1131, 0
        %v1139 = vsel %vm848, %v1132, 0
        %v1142 = vsel %vm848, %v1133, 0
        %v1145 = vsel %vm848, %v1134, 0
        %1147 = vmatprep.subr.bf16.mxu0 0
        %1148 = vmatpush1.bf16.msra.mxu0 %v1113
        %1149 = vmatprep.subr.bf16.mxu0 0
        %1150 = vmatpush1.bf16.msra.mxu0 %v1114
        %1151 = vmatprep.subr.bf16.mxu0 0
        %1152 = vmatpush1.bf16.msra.mxu0 0
        %1153 = vmatprep.subr.bf16.mxu0 0
        %1154 = vmatpush1.bf16.msra.mxu0 0
        %1155 = vmatprep.subr.bf16.mxu0 0
        %1156 = vmatpush1.bf16.msra.mxu0 0
        %1157 = vmatprep.subr.bf16.mxu0 0
        %1158 = vmatpush1.bf16.msra.mxu0 0
        %1159 = vmatprep.subr.bf16.mxu0 0
        %1160 = vmatpush1.bf16.msra.mxu0 0
        %1161 = vmatprep.subr.bf16.mxu0 0
        %1162 = vmatpush1.bf16.msra.mxu0 0
        %1163 = vmatprep.subr.bf16.mxu0 0
        %1164 = vmatpush1.bf16.msra.mxu0 0
        %1165 = vmatprep.subr.bf16.mxu0 0
        %1166 = vmatpush1.bf16.msra.mxu0 0
        %1167 = vmatprep.subr.bf16.mxu0 0
        %1168 = vmatpush1.bf16.msra.mxu0 0
        %1169 = vmatprep.subr.bf16.mxu0 0
        %1170 = vmatpush1.bf16.msra.mxu0 0
        %1171 = vmatprep.subr.bf16.mxu0 0
        %1172 = vmatpush1.bf16.msra.mxu0 0
        %1173 = vmatprep.subr.bf16.mxu0 0
        %1174 = vmatpush1.bf16.msra.mxu0 0
        %1175 = vmatprep.subr.bf16.mxu0 0
        %1176 = vmatpush1.bf16.msra.mxu0 0
        %1177 = vmatprep.subr.bf16.mxu0 0
        %1178 = vmatpush1.bf16.msra.mxu0 0
        %1179 = vmatprep.mubr.bf16.mxu0 0
        %1180 = vmatmul.mubr.bf16.gmra.mrb[0].mxu0 %v1136
        %v1181 = vpop.f32.mrb[0].mxu0
        %v1182 = vadd.f32 0.0, %v1181
        %v1183 = vpop.f32.mrb[0].mxu0
        %v1184 = vpop.f32.mrb[0].mxu0
        %v1185 = vadd.f32 0.0, %v1184
        %v1186 = vpop.f32.mrb[0].mxu0
        %1187 = vmatprep.mubr.bf16.mxu0 0
        %1188 = vmatmul.mubr.bf16.gmra.mrb[0].mxu0 %v1139
        %v1189 = vpop.f32.mrb[0].mxu0
        %v1190 = vadd.f32 0.0, %v1189
        %v1191 = vpop.f32.mrb[0].mxu0
        %v1192 = vpop.f32.mrb[0].mxu0
        %v1193 = vadd.f32 0.0, %v1192
        %v1194 = vpop.f32.mrb[0].mxu0
        %1195 = vmatprep.mubr.bf16.mxu0 0
        %1196 = vmatmul.mubr.bf16.gmra.mrb[0].mxu0 %v1142
        %v1197 = vpop.f32.mrb[0].mxu0
        %v1198 = vadd.f32 0.0, %v1197
        %v1199 = vpop.f32.mrb[0].mxu0
        %v1200 = vpop.f32.mrb[0].mxu0
        %v1201 = vadd.f32 0.0, %v1200
        %v1202 = vpop.f32.mrb[0].mxu0
        %1203 = vmatprep.mubr.bf16.mxu0 0
        %1204 = vmatmul.mubr.bf16.gmra.mrb[0].mxu0 %v1145
        %v1205 = vpop.f32.mrb[0].mxu0
        %v1206 = vadd.f32 0.0, %v1205
        %v1207 = vpop.f32.mrb[0].mxu0
        %v1208 = vpop.f32.mrb[0].mxu0
        %v1209 = vadd.f32 0.0, %v1208
        %v1210 = vpop.f32.mrb[0].mxu0
        %1211 = vdwg.mxu0
        %v1212 = vadd.f32 %v1093, %v1182
        %v1213 = vadd.f32 %v1094, %v1185
        %v1214 = vadd.f32 %v1095, %v1190
        %v1215 = vadd.f32 %v1096, %v1193
        %v1216 = vadd.f32 %v1097, %v1198
        %v1217 = vadd.f32 %v1098, %v1201
        %v1218 = vadd.f32 %v1099, %v1206
        %v1219 = vadd.f32 %v1100, %v1209
        %s1220 = scalar_lea.vmem %s690, 32
        %v1221 = vld [vmem:[%s1220] sm:$0xf]
        %v1222 = vld [vmem:[%s1220 + $0x4] sm:$0xf]
        %v1223 = vld [vmem:[%s1220 + $0x8] sm:$0xf]
        %v1224 = vld [vmem:[%s1220 + $0xc] sm:$0xf]
        %v1225 = vld [vmem:[%s1220 + $0x10] sm:$0xf]
        %v1226 = vld [vmem:[%s1220 + $0x14] sm:$0xf]
        %v1227 = vld [vmem:[%s1220 + $0x18] sm:$0xf]
        %v1228 = vld [vmem:[%s1220 + $0x1c] sm:$0xf]
        %v1237 = vunpack.c.l.b16 %v1221
        %v1238 = vunpack.c.l.b16 %v1222
        %v1239 = vunpack.c.l.b16 %v1223
        %v1240 = vunpack.c.l.b16 %v1224
        %v1241 = vunpack.c.l.b16 %v1225
        %v1242 = vunpack.c.l.b16 %v1226
        %v1243 = vunpack.c.l.b16 %v1227
        %v1244 = vunpack.c.l.b16 %v1228
        %v1245 = vpack.c.b16 %v1238, %v1237
        %v1246 = vpack.c.b16 %v1240, %v1239
        %v1247 = vpack.c.b16 %v1242, %v1241
        %v1248 = vpack.c.b16 %v1244, %v1243
        %1251 = vrot.lane.b32.xlu0 %v1113, 127
        %v1252 = vpop.permute.xlu0 %1251
        %1253 = vrot.lane.b32.xlu0 %v1114, 127
        %v1254 = vpop.permute.xlu0 %1253
        %v1258 = vsel %vm848, %v1245, 0
        %v1261 = vsel %vm848, %v1246, 0
        %v1264 = vsel %vm848, %v1247, 0
        %v1267 = vsel %vm848, %v1248, 0
        %1269 = vmatprep.subr.bf16.mxu0 0
        %1270 = vmatpush1.bf16.msra.mxu0 %v1252
        %1271 = vmatprep.subr.bf16.mxu0 0
        %1272 = vmatpush1.bf16.msra.mxu0 %v1254
        %1273 = vmatprep.subr.bf16.mxu0 0
        %1274 = vmatpush1.bf16.msra.mxu0 0
        %1275 = vmatprep.subr.bf16.mxu0 0
        %1276 = vmatpush1.bf16.msra.mxu0 0
        %1277 = vmatprep.subr.bf16.mxu0 0
        %1278 = vmatpush1.bf16.msra.mxu0 0
        %1279 = vmatprep.subr.bf16.mxu0 0
        %1280 = vmatpush1.bf16.msra.mxu0 0
        %1281 = vmatprep.subr.bf16.mxu0 0
        %1282 = vmatpush1.bf16.msra.mxu0 0
        %1283 = vmatprep.subr.bf16.mxu0 0
        %1284 = vmatpush1.bf16.msra.mxu0 0
        %1285 = vmatprep.subr.bf16.mxu0 0
        %1286 = vmatpush1.bf16.msra.mxu0 0
        %1287 = vmatprep.subr.bf16.mxu0 0
        %1288 = vmatpush1.bf16.msra.mxu0 0
        %1289 = vmatprep.subr.bf16.mxu0 0
        %1290 = vmatpush1.bf16.msra.mxu0 0
        %1291 = vmatprep.subr.bf16.mxu0 0
        %1292 = vmatpush1.bf16.msra.mxu0 0
        %1293 = vmatprep.subr.bf16.mxu0 0
        %1294 = vmatpush1.bf16.msra.mxu0 0
        %1295 = vmatprep.subr.bf16.mxu0 0
        %1296 = vmatpush1.bf16.msra.mxu0 0
        %1297 = vmatprep.subr.bf16.mxu0 0
        %1298 = vmatpush1.bf16.msra.mxu0 0
        %1299 = vmatprep.subr.bf16.mxu0 0
        %1300 = vmatpush1.bf16.msra.mxu0 0
        %1301 = vmatprep.mubr.bf16.mxu0 0
        %1302 = vmatmul.mubr.bf16.gmra.mrb[0].mxu0 %v1258
        %v1303 = vpop.f32.mrb[0].mxu0
        %v1304 = vadd.f32 0.0, %v1303
        %v1305 = vpop.f32.mrb[0].mxu0
        %v1306 = vpop.f32.mrb[0].mxu0
        %v1307 = vadd.f32 0.0, %v1306
        %v1308 = vpop.f32.mrb[0].mxu0
        %1309 = vmatprep.mubr.bf16.mxu0 0
        %1310 = vmatmul.mubr.bf16.gmra.mrb[0].mxu0 %v1261
        %v1311 = vpop.f32.mrb[0].mxu0
        %v1312 = vadd.f32 0.0, %v1311
        %v1313 = vpop.f32.mrb[0].mxu0
        %v1314 = vpop.f32.mrb[0].mxu0
        %v1315 = vadd.f32 0.0, %v1314
        %v1316 = vpop.f32.mrb[0].mxu0
        %1317 = vmatprep.mubr.bf16.mxu0 0
        %1318 = vmatmul.mubr.bf16.gmra.mrb[0].mxu0 %v1264
        %v1319 = vpop.f32.mrb[0].mxu0
        %v1320 = vadd.f32 0.0, %v1319
        %v1321 = vpop.f32.mrb[0].mxu0
        %v1322 = vpop.f32.mrb[0].mxu0
        %v1323 = vadd.f32 0.0, %v1322
        %v1324 = vpop.f32.mrb[0].mxu0
        %1325 = vmatprep.mubr.bf16.mxu0 0
        %1326 = vmatmul.mubr.bf16.gmra.mrb[0].mxu0 %v1267
        %v1327 = vpop.f32.mrb[0].mxu0
        %v1328 = vadd.f32 0.0, %v1327
        %v1329 = vpop.f32.mrb[0].mxu0
        %v1330 = vpop.f32.mrb[0].mxu0
        %v1331 = vadd.f32 0.0, %v1330
        %v1332 = vpop.f32.mrb[0].mxu0
        %1333 = vdwg.mxu0
        %v1334 = vadd.f32 %v1212, %v1304
        %v1335 = vadd.f32 %v1213, %v1307
        %v1336 = vadd.f32 %v1214, %v1312
        %v1337 = vadd.f32 %v1215, %v1315
        %v1338 = vadd.f32 %v1216, %v1320
        %v1339 = vadd.f32 %v1217, %v1323
        %v1340 = vadd.f32 %v1218, %v1328
        %v1341 = vadd.f32 %v1219, %v1331
        %s1342 = scalar_lea.vmem %s690, 64
        %v1343 = vld [vmem:[%s1342] sm:$0xf]
        %v1344 = vld [vmem:[%s1342 + $0x4] sm:$0xf]
        %v1345 = vld [vmem:[%s1342 + $0x8] sm:$0xf]
        %v1346 = vld [vmem:[%s1342 + $0xc] sm:$0xf]
        %v1347 = vld [vmem:[%s1342 + $0x10] sm:$0xf]
        %v1348 = vld [vmem:[%s1342 + $0x14] sm:$0xf]
        %v1349 = vld [vmem:[%s1342 + $0x18] sm:$0xf]
        %v1350 = vld [vmem:[%s1342 + $0x1c] sm:$0xf]
        %v1359 = vunpack.c.l.b16 %v1343
        %v1360 = vunpack.c.l.b16 %v1344
        %v1361 = vunpack.c.l.b16 %v1345
        %v1362 = vunpack.c.l.b16 %v1346
        %v1363 = vunpack.c.l.b16 %v1347
        %v1364 = vunpack.c.l.b16 %v1348
        %v1365 = vunpack.c.l.b16 %v1349
        %v1366 = vunpack.c.l.b16 %v1350
        %v1367 = vpack.c.b16 %v1360, %v1359
        %v1368 = vpack.c.b16 %v1362, %v1361
        %v1369 = vpack.c.b16 %v1364, %v1363
        %v1370 = vpack.c.b16 %v1366, %v1365
        %1371 = vrot.lane.b32.xlu0 %v1113, 126
        %v1372 = vpop.permute.xlu0 %1371
        %1373 = vrot.lane.b32.xlu0 %v1114, 126
        %v1374 = vpop.permute.xlu0 %1373
        %v1378 = vsel %vm848, %v1367, 0
        %v1381 = vsel %vm848, %v1368, 0
        %v1384 = vsel %vm848, %v1369, 0
        %v1387 = vsel %vm848, %v1370, 0
        %1389 = vmatprep.subr.bf16.mxu0 0
        %1390 = vmatpush1.bf16.msra.mxu0 %v1372
        %1391 = vmatprep.subr.bf16.mxu0 0
        %1392 = vmatpush1.bf16.msra.mxu0 %v1374
        %1393 = vmatprep.subr.bf16.mxu0 0
        %1394 = vmatpush1.bf16.msra.mxu0 0
        %1395 = vmatprep.subr.bf16.mxu0 0
        %1396 = vmatpush1.bf16.msra.mxu0 0
        %1397 = vmatprep.subr.bf16.mxu0 0
        %1398 = vmatpush1.bf16.msra.mxu0 0
        %1399 = vmatprep.subr.bf16.mxu0 0
        %1400 = vmatpush1.bf16.msra.mxu0 0
        %1401 = vmatprep.subr.bf16.mxu0 0
        %1402 = vmatpush1.bf16.msra.mxu0 0
        %1403 = vmatprep.subr.bf16.mxu0 0
        %1404 = vmatpush1.bf16.msra.mxu0 0
        %1405 = vmatprep.subr.bf16.mxu0 0
        %1406 = vmatpush1.bf16.msra.mxu0 0
        %1407 = vmatprep.subr.bf16.mxu0 0
        %1408 = vmatpush1.bf16.msra.mxu0 0
        %1409 = vmatprep.subr.bf16.mxu0 0
        %1410 = vmatpush1.bf16.msra.mxu0 0
        %1411 = vmatprep.subr.bf16.mxu0 0
        %1412 = vmatpush1.bf16.msra.mxu0 0
        %1413 = vmatprep.subr.bf16.mxu0 0
        %1414 = vmatpush1.bf16.msra.mxu0 0
        %1415 = vmatprep.subr.bf16.mxu0 0
        %1416 = vmatpush1.bf16.msra.mxu0 0
        %1417 = vmatprep.subr.bf16.mxu0 0
        %1418 = vmatpush1.bf16.msra.mxu0 0
        %1419 = vmatprep.subr.bf16.mxu0 0
        %1420 = vmatpush1.bf16.msra.mxu0 0
        %1421 = vmatprep.mubr.bf16.mxu0 0
        %1422 = vmatmul.mubr.bf16.gmra.mrb[0].mxu0 %v1378
        %v1423 = vpop.f32.mrb[0].mxu0
        %v1424 = vadd.f32 0.0, %v1423
        %v1425 = vpop.f32.mrb[0].mxu0
        %v1426 = vpop.f32.mrb[0].mxu0
        %v1427 = vadd.f32 0.0, %v1426
        %v1428 = vpop.f32.mrb[0].mxu0
        %1429 = vmatprep.mubr.bf16.mxu0 0
        %1430 = vmatmul.mubr.bf16.gmra.mrb[0].mxu0 %v1381
        %v1431 = vpop.f32.mrb[0].mxu0
        %v1432 = vadd.f32 0.0, %v1431
        %v1433 = vpop.f32.mrb[0].mxu0
        %v1434 = vpop.f32.mrb[0].mxu0
        %v1435 = vadd.f32 0.0, %v1434
        %v1436 = vpop.f32.mrb[0].mxu0
        %1437 = vmatprep.mubr.bf16.mxu0 0
        %1438 = vmatmul.mubr.bf16.gmra.mrb[0].mxu0 %v1384
        %v1439 = vpop.f32.mrb[0].mxu0
        %v1440 = vadd.f32 0.0, %v1439
        %v1441 = vpop.f32.mrb[0].mxu0
        %v1442 = vpop.f32.mrb[0].mxu0
        %v1443 = vadd.f32 0.0, %v1442
        %v1444 = vpop.f32.mrb[0].mxu0
        %1445 = vmatprep.mubr.bf16.mxu0 0
        %1446 = vmatmul.mubr.bf16.gmra.mrb[0].mxu0 %v1387
        %v1447 = vpop.f32.mrb[0].mxu0
        %v1448 = vadd.f32 0.0, %v1447
        %v1449 = vpop.f32.mrb[0].mxu0
        %v1450 = vpop.f32.mrb[0].mxu0
        %v1451 = vadd.f32 0.0, %v1450
        %v1452 = vpop.f32.mrb[0].mxu0
        %1453 = vdwg.mxu0
        %v1454 = vadd.f32 %v1334, %v1424
        %v1455 = vadd.f32 %v1335, %v1427
        %v1456 = vadd.f32 %v1336, %v1432
        %v1457 = vadd.f32 %v1337, %v1435
        %v1458 = vadd.f32 %v1338, %v1440
        %v1459 = vadd.f32 %v1339, %v1443
        %v1460 = vadd.f32 %v1340, %v1448
        %v1461 = vadd.f32 %v1341, %v1451
        %v1462 = vxor.u32 %v1454, 2147483648
        %v1463 = vxor.u32 %v1455, 2147483648
        %v1464 = vxor.u32 %v1456, 2147483648
        %v1465 = vxor.u32 %v1457, 2147483648
        %v1466 = vmul.f32 %v1462, 1.442695
        %v1467 = vpow.pop %v1466
        %v1468 = vmul.f32 %v1463, 1.442695
        %v1469 = vpow.pop %v1468
        %v1470 = vmul.f32 %v1464, 1.442695
        %v1471 = vpow.pop %v1470
        %v1472 = vmul.f32 %v1465, 1.442695
        %v1473 = vpow.pop %v1472
        %v1474 = vadd.f32 %v1467, 1.0
        %v1475 = vadd.f32 %v1469, 1.0
        %v1476 = vadd.f32 %v1471, 1.0
        %v1477 = vadd.f32 %v1473, 1.0
        %v1478 = vrcp.pop %v1474
        %v1479 = vmul.f32 1.0, %v1478
        %v1480 = vrcp.pop %v1475
        %v1481 = vmul.f32 1.0, %v1480
        %v1482 = vrcp.pop %v1476
        %v1483 = vmul.f32 1.0, %v1482
        %v1484 = vrcp.pop %v1477
        %v1485 = vmul.f32 1.0, %v1484
        %v1486 = vtanh.pop %v1458
        %v1487 = vtanh.pop %v1459
        %v1488 = vtanh.pop %v1460
        %v1489 = vtanh.pop %v1461
        %v1490 = vmul.f32 %v1479, %v1486
        %v1491 = vmul.f32 %v1481, %v1487
        %v1492 = vmul.f32 %v1483, %v1488
        %v1493 = vmul.f32 %v1485, %v1489
        %v1494 = vld [vmem:[%s700] sm:$0xf]
        %v1495 = vld [vmem:[%s700 + $0x4] sm:$0xf]
        %v1496 = vld [vmem:[%s700 + $0x8] sm:$0xf]
        %v1497 = vld [vmem:[%s700 + $0xc] sm:$0xf]
        %v1498 = vld [vmem:[%s700 + $0x10] sm:$0xf]
        %v1499 = vld [vmem:[%s700 + $0x14] sm:$0xf]
        %v1500 = vld [vmem:[%s700 + $0x18] sm:$0xf]
        %v1501 = vld [vmem:[%s700 + $0x1c] sm:$0xf]
        %v1502 = vpack.c.bf16 %v1491, %v1490
        %v1503 = vpack.c.bf16 %v1493, %v1492
        %v1504 = vld [vmem:[%s705] sm:$0xff]
        %v1505 = vld [vmem:[%s705 + $0x8] sm:$0xff]
        %v1506 = vld [vmem:[%s705 + $0x10] sm:$0xff]
        %v1507 = vld [vmem:[%s705 + $0x18] sm:$0xff]
        %v1508 = vld [vmem:[%s705 + $0x20] sm:$0xff]
        %v1509 = vld [vmem:[%s705 + $0x28] sm:$0xff]
        %v1510 = vld [vmem:[%s705 + $0x30] sm:$0xff]
        %v1511 = vld [vmem:[%s705 + $0x38] sm:$0xff]
        %1513 = vset.pattern.permute.xlu0 0
        %1514 = vperm.xlu0 %1513, %v1504
        %v1515 = vpop.permute.xlu0 %1514
        %1518 = vset.pattern.permute.xlu0 0
        %1519 = vperm.xlu0 %1518, %v1505
        %v1520 = vpop.permute.xlu0 %1519
        %1523 = vset.pattern.permute.xlu0 0
        %1524 = vperm.xlu0 %1523, %v1506
        %v1525 = vpop.permute.xlu0 %1524
        %1528 = vset.pattern.permute.xlu0 0
        %1529 = vperm.xlu0 %1528, %v1507
        %v1530 = vpop.permute.xlu0 %1529
        %1533 = vset.pattern.permute.xlu0 0
        %1534 = vperm.xlu0 %1533, %v1508
        %v1535 = vpop.permute.xlu0 %1534
        %1538 = vset.pattern.permute.xlu0 0
        %1539 = vperm.xlu0 %1538, %v1509
        %v1540 = vpop.permute.xlu0 %1539
        %1543 = vset.pattern.permute.xlu0 0
        %1544 = vperm.xlu0 %1543, %v1510
        %v1545 = vpop.permute.xlu0 %1544
        %1548 = vset.pattern.permute.xlu0 0
        %1549 = vperm.xlu0 %1548, %v1511
        %v1550 = vpop.permute.xlu0 %1549
        %v1560 = vunpack.c.l.b16 %v1494
        %v1561 = vunpack.c.l.b16 %v1495
        %v1562 = vunpack.c.l.b16 %v1496
        %v1563 = vunpack.c.l.b16 %v1497
        %v1564 = vunpack.c.l.b16 %v1498
        %v1565 = vunpack.c.l.b16 %v1499
        %v1566 = vunpack.c.l.b16 %v1500
        %v1567 = vunpack.c.l.b16 %v1501
        %v1568 = vpack.c.b16 %v1561, %v1560
        %v1569 = vpack.c.b16 %v1563, %v1562
        %v1570 = vpack.c.b16 %v1565, %v1564
        %v1571 = vpack.c.b16 %v1567, %v1566
        %v1573 = vsel %vm848, %v1568, 0
        %v1576 = vsel %vm848, %v1569, 0
        %v1579 = vsel %vm848, %v1570, 0
        %v1582 = vsel %vm848, %v1571, 0
        %1584 = vmatprep.subr.bf16.mxu0 0
        %1585 = vmatpush1.bf16.msra.mxu0 %v1502
        %1586 = vmatprep.subr.bf16.mxu0 0
        %1587 = vmatpush1.bf16.msra.mxu0 %v1503
        %1588 = vmatprep.subr.bf16.mxu0 0
        %1589 = vmatpush1.bf16.msra.mxu0 0
        %1590 = vmatprep.subr.bf16.mxu0 0
        %1591 = vmatpush1.bf16.msra.mxu0 0
        %1592 = vmatprep.subr.bf16.mxu0 0
        %1593 = vmatpush1.bf16.msra.mxu0 0
        %1594 = vmatprep.subr.bf16.mxu0 0
        %1595 = vmatpush1.bf16.msra.mxu0 0
        %1596 = vmatprep.subr.bf16.mxu0 0
        %1597 = vmatpush1.bf16.msra.mxu0 0
        %1598 = vmatprep.subr.bf16.mxu0 0
        %1599 = vmatpush1.bf16.msra.mxu0 0
        %1600 = vmatprep.subr.bf16.mxu0 0
        %1601 = vmatpush1.bf16.msra.mxu0 0
        %1602 = vmatprep.subr.bf16.mxu0 0
        %1603 = vmatpush1.bf16.msra.mxu0 0
        %1604 = vmatprep.subr.bf16.mxu0 0
        %1605 = vmatpush1.bf16.msra.mxu0 0
        %1606 = vmatprep.subr.bf16.mxu0 0
        %1607 = vmatpush1.bf16.msra.mxu0 0
        %1608 = vmatprep.subr.bf16.mxu0 0
        %1609 = vmatpush1.bf16.msra.mxu0 0
        %1610 = vmatprep.subr.bf16.mxu0 0
        %1611 = vmatpush1.bf16.msra.mxu0 0
        %1612 = vmatprep.subr.bf16.mxu0 0
        %1613 = vmatpush1.bf16.msra.mxu0 0
        %1614 = vmatprep.subr.bf16.mxu0 0
        %1615 = vmatpush1.bf16.msra.mxu0 0
        %1616 = vmatprep.mubr.bf16.mxu0 0
        %1617 = vmatmul.mubr.bf16.gmra.mrb[0].mxu0 %v1573
        %v1618 = vpop.f32.mrb[0].mxu0
        %v1619 = vadd.f32 %v1515, %v1618
        %v1620 = vpop.f32.mrb[0].mxu0
        %v1621 = vpop.f32.mrb[0].mxu0
        %v1622 = vadd.f32 %v1520, %v1621
        %v1623 = vpop.f32.mrb[0].mxu0
        %1624 = vmatprep.mubr.bf16.mxu0 0
        %1625 = vmatmul.mubr.bf16.gmra.mrb[0].mxu0 %v1576
        %v1626 = vpop.f32.mrb[0].mxu0
        %v1627 = vadd.f32 %v1525, %v1626
        %v1628 = vpop.f32.mrb[0].mxu0
        %v1629 = vpop.f32.mrb[0].mxu0
        %v1630 = vadd.f32 %v1530, %v1629
        %v1631 = vpop.f32.mrb[0].mxu0
        %1632 = vmatprep.mubr.bf16.mxu0 0
        %1633 = vmatmul.mubr.bf16.gmra.mrb[0].mxu0 %v1579
        %v1634 = vpop.f32.mrb[0].mxu0
        %v1635 = vadd.f32 %v1535, %v1634
        %v1636 = vpop.f32.mrb[0].mxu0
        %v1637 = vpop.f32.mrb[0].mxu0
        %v1638 = vadd.f32 %v1540, %v1637
        %v1639 = vpop.f32.mrb[0].mxu0
        %1640 = vmatprep.mubr.bf16.mxu0 0
        %1641 = vmatmul.mubr.bf16.gmra.mrb[0].mxu0 %v1582
        %v1642 = vpop.f32.mrb[0].mxu0
        %v1643 = vadd.f32 %v1545, %v1642
        %v1644 = vpop.f32.mrb[0].mxu0
        %v1645 = vpop.f32.mrb[0].mxu0
        %v1646 = vadd.f32 %v1550, %v1645
        %v1647 = vpop.f32.mrb[0].mxu0
        %1648 = vdwg.mxu0
        %v1649 = vadd.f32 %v825, %v1619
        %v1650 = vadd.f32 %v826, %v1622
        %v1651 = vadd.f32 %v827, %v1627
        %v1652 = vadd.f32 %v828, %v1630
        %v1653 = vmul.f32 %v1649, 0.70710677
        %v1654 = vmul.f32 %v1650, 0.70710677
        %v1655 = vmul.f32 %v1651, 0.70710677
        %v1656 = vmul.f32 %v1652, 0.70710677
        %vm1657 = vcmask 130048
        %1658 = vst.msk [vmem:[#allocation2] sm:$0xff] %vm1657, %v1653
        %1659 = vst.msk [vmem:[#allocation2 + $0x8] sm:$0xff] %vm1657, %v1654
        %1660 = vst.msk [vmem:[#allocation2 + $0x10] sm:$0xff] %vm1657, %v1655
        %1661 = vst.msk [vmem:[#allocation2 + $0x18] sm:$0xff] %vm1657, %v1656
        %v1662 = vld [vmem:[#allocation3] sm:$0xff]
        %v1663 = vld [vmem:[#allocation3 + $0x8] sm:$0xff]
        %v1664 = vld [vmem:[#allocation3 + $0x10] sm:$0xff]
        %v1665 = vld [vmem:[#allocation3 + $0x18] sm:$0xff]
        %v1666 = vadd.f32 %v1662, %v1635
        %v1667 = vadd.f32 %v1663, %v1638
        %v1668 = vadd.f32 %v1664, %v1643
        %v1669 = vadd.f32 %v1665, %v1646
        %1670 = vst.msk [vmem:[#allocation3] sm:$0xff] %vm1657, %v1666
        %1671 = vst.msk [vmem:[#allocation3 + $0x8] sm:$0xff] %vm1657, %v1667
        %1672 = vst.msk [vmem:[#allocation3 + $0x10] sm:$0xff] %vm1657, %v1668
        %1673 = vst.msk [vmem:[#allocation3 + $0x18] sm:$0xff] %vm1657, %v1669
        %p1674 = scmp.eq.s32.totalorder %s35, 3
        // Predicated region
        $region89: #{tpu_custom_call.1} parent=83 // pred_check
          %p1675 = pneg %p1674
        $region90: #{tpu_custom_call.1} parent=83 // pred_check_branch
          %1677 = sbr.rel (%p1675) target = $region92
        $region91: #{tpu_custom_call.1} parent=83 // pred_region
          %v1678 = vld [vmem:[#allocation3] sm:$0xff]
          %v1679 = vld [vmem:[#allocation3 + $0x8] sm:$0xff]
          %v1680 = vld [vmem:[#allocation3 + $0x10] sm:$0xff]
          %v1681 = vld [vmem:[#allocation3 + $0x18] sm:$0xff]
          %v1682 = vmul.f32 %v1678, 0.5
          %v1683 = vmul.f32 %v1679, 0.5
          %v1684 = vmul.f32 %v1680, 0.5
          %v1685 = vmul.f32 %v1681, 0.5
          %v1686 = vld [vmem:[%s12] sm:$0xf]
          %v1687 = vld [vmem:[%s12 + $0x4] sm:$0xf]
          %v1688 = vld [vmem:[%s12 + $0x8] sm:$0xf]
          %v1689 = vld [vmem:[%s12 + $0xc] sm:$0xf]
          %v1690 = vpack.c.bf16 %v1683, %v1682
          %v1691 = vpack.c.bf16 %v1685, %v1684
          %v1692 = vld [vmem:[%s13] sm:$0xff]
          %v1693 = vld [vmem:[%s13 + $0x8] sm:$0xff]
          %v1694 = vld [vmem:[%s13 + $0x10] sm:$0xff]
          %v1695 = vld [vmem:[%s13 + $0x18] sm:$0xff]
          %1697 = vset.pattern.permute.xlu0 0
          %1698 = vperm.xlu0 %1697, %v1692
          %v1699 = vpop.permute.xlu0 %1698
          %1702 = vset.pattern.permute.xlu0 0
          %1703 = vperm.xlu0 %1702, %v1693
          %v1704 = vpop.permute.xlu0 %1703
          %1707 = vset.pattern.permute.xlu0 0
          %1708 = vperm.xlu0 %1707, %v1694
          %v1709 = vpop.permute.xlu0 %1708
          %1712 = vset.pattern.permute.xlu0 0
          %1713 = vperm.xlu0 %1712, %v1695
          %v1714 = vpop.permute.xlu0 %1713
          %v1720 = vunpack.c.l.b16 %v1686
          %v1721 = vunpack.c.l.b16 %v1687
          %v1722 = vunpack.c.l.b16 %v1688
          %v1723 = vunpack.c.l.b16 %v1689
          %v1724 = vpack.c.b16 %v1721, %v1720
          %v1725 = vpack.c.b16 %v1723, %v1722
          %v1727 = vsel %vm848, %v1724, 0
          %v1730 = vsel %vm848, %v1725, 0
          %1732 = vmatprep.subr.bf16.mxu0 0
          %1733 = vmatpush1.bf16.msra.mxu0 %v1690
          %1734 = vmatprep.subr.bf16.mxu0 0
          %1735 = vmatpush1.bf16.msra.mxu0 %v1691
          %1736 = vmatprep.subr.bf16.mxu0 0
          %1737 = vmatpush1.bf16.msra.mxu0 0
          %1738 = vmatprep.subr.bf16.mxu0 0
          %1739 = vmatpush1.bf16.msra.mxu0 0
          %1740 = vmatprep.subr.bf16.mxu0 0
          %1741 = vmatpush1.bf16.msra.mxu0 0
          %1742 = vmatprep.subr.bf16.mxu0 0
          %1743 = vmatpush1.bf16.msra.mxu0 0
          %1744 = vmatprep.subr.bf16.mxu0 0
          %1745 = vmatpush1.bf16.msra.mxu0 0
          %1746 = vmatprep.subr.bf16.mxu0 0
          %1747 = vmatpush1.bf16.msra.mxu0 0
          %1748 = vmatprep.subr.bf16.mxu0 0
          %1749 = vmatpush1.bf16.msra.mxu0 0
          %1750 = vmatprep.subr.bf16.mxu0 0
          %1751 = vmatpush1.bf16.msra.mxu0 0
          %1752 = vmatprep.subr.bf16.mxu0 0
          %1753 = vmatpush1.bf16.msra.mxu0 0
          %1754 = vmatprep.subr.bf16.mxu0 0
          %1755 = vmatpush1.bf16.msra.mxu0 0
          %1756 = vmatprep.subr.bf16.mxu0 0
          %1757 = vmatpush1.bf16.msra.mxu0 0
          %1758 = vmatprep.subr.bf16.mxu0 0
          %1759 = vmatpush1.bf16.msra.mxu0 0
          %1760 = vmatprep.subr.bf16.mxu0 0
          %1761 = vmatpush1.bf16.msra.mxu0 0
          %1762 = vmatprep.subr.bf16.mxu0 0
          %1763 = vmatpush1.bf16.msra.mxu0 0
          %1764 = vmatprep.mubr.bf16.mxu0 0
          %1765 = vmatmul.mubr.bf16.gmra.mrb[0].mxu0 %v1727
          %v1766 = vpop.f32.mrb[0].mxu0
          %v1767 = vadd.f32 %v1699, %v1766
          %v1768 = vpop.f32.mrb[0].mxu0
          %v1769 = vpop.f32.mrb[0].mxu0
          %v1770 = vadd.f32 %v1704, %v1769
          %v1771 = vpop.f32.mrb[0].mxu0
          %1772 = vmatprep.mubr.bf16.mxu0 0
          %1773 = vmatmul.mubr.bf16.gmra.mrb[0].mxu0 %v1730
          %v1774 = vpop.f32.mrb[0].mxu0
          %v1775 = vadd.f32 %v1709, %v1774
          %v1776 = vpop.f32.mrb[0].mxu0
          %v1777 = vpop.f32.mrb[0].mxu0
          %v1778 = vadd.f32 %v1714, %v1777
          %v1779 = vpop.f32.mrb[0].mxu0
          %1780 = vdwg.mxu0
          %v1781 = vmax.f32 %v1767, 0.0
          %v1782 = vmax.f32 %v1770, 0.0
          %v1783 = vmax.f32 %v1775, 0.0
          %v1784 = vmax.f32 %v1778, 0.0
          %v1785 = vld [vmem:[%s14] sm:$0xf]
          %v1786 = vld [vmem:[%s14 + $0x4] sm:$0xf]
          %v1787 = vpack.c.bf16 %v1782, %v1781
          %v1788 = vpack.c.bf16 %v1784, %v1783
          %v1789 = vld [vmem:[%s15] sm:$0xff]
          %v1790 = vld [vmem:[%s15 + $0x8] sm:$0xff]
          %1792 = vset.pattern.permute.xlu0 0
          %1793 = vperm.xlu0 %1792, %v1789
          %v1794 = vpop.permute.xlu0 %1793
          %1797 = vset.pattern.permute.xlu0 0
          %1798 = vperm.xlu0 %1797, %v1790
          %v1799 = vpop.permute.xlu0 %1798
          %v1803 = vunpack.c.l.b16 %v1785
          %v1804 = vunpack.c.l.b16 %v1786
          %v1805 = vpack.c.b16 %v1804, %v1803
          %v1807 = vsel %vm848, %v1805, 0
          %1809 = vmatprep.subr.bf16.mxu0 0
          %1810 = vmatpush1.bf16.msra.mxu0 %v1787
          %1811 = vmatprep.subr.bf16.mxu0 0
          %1812 = vmatpush1.bf16.msra.mxu0 %v1788
          %1813 = vmatprep.subr.bf16.mxu0 0
          %1814 = vmatpush1.bf16.msra.mxu0 0
          %1815 = vmatprep.subr.bf16.mxu0 0
          %1816 = vmatpush1.bf16.msra.mxu0 0
          %1817 = vmatprep.subr.bf16.mxu0 0
          %1818 = vmatpush1.bf16.msra.mxu0 0
          %1819 = vmatprep.subr.bf16.mxu0 0
          %1820 = vmatpush1.bf16.msra.mxu0 0
          %1821 = vmatprep.subr.bf16.mxu0 0
          %1822 = vmatpush1.bf16.msra.mxu0 0
          %1823 = vmatprep.subr.bf16.mxu0 0
          %1824 = vmatpush1.bf16.msra.mxu0 0
          %1825 = vmatprep.subr.bf16.mxu0 0
          %1826 = vmatpush1.bf16.msra.mxu0 0
          %1827 = vmatprep.subr.bf16.mxu0 0
          %1828 = vmatpush1.bf16.msra.mxu0 0
          %1829 = vmatprep.subr.bf16.mxu0 0
          %1830 = vmatpush1.bf16.msra.mxu0 0
          %1831 = vmatprep.subr.bf16.mxu0 0
          %1832 = vmatpush1.bf16.msra.mxu0 0
          %1833 = vmatprep.subr.bf16.mxu0 0
          %1834 = vmatpush1.bf16.msra.mxu0 0
          %1835 = vmatprep.subr.bf16.mxu0 0
          %1836 = vmatpush1.bf16.msra.mxu0 0
          %1837 = vmatprep.subr.bf16.mxu0 0
          %1838 = vmatpush1.bf16.msra.mxu0 0
          %1839 = vmatprep.subr.bf16.mxu0 0
          %1840 = vmatpush1.bf16.msra.mxu0 0
          %1841 = vmatprep.mubr.bf16.mxu0 0
          %1842 = vmatmul.mubr.bf16.gmra.mrb[0].mxu0 %v1807
          %v1843 = vpop.f32.mrb[0].mxu0
          %v1844 = vadd.f32 %v1794, %v1843
          %v1845 = vpop.f32.mrb[0].mxu0
          %v1846 = vpop.f32.mrb[0].mxu0
          %v1847 = vadd.f32 %v1799, %v1846
          %v1848 = vpop.f32.mrb[0].mxu0
          %1849 = vdwg.mxu0
          %1850 = vst.msk [vmem:[%s657] sm:$0xff] %vm1657, %v1844
          %1851 = vst.msk [vmem:[%s657 + $0x8] sm:$0xff] %vm1657, %v1847
        $region92: #{tpu_custom_call.1} parent=83 // pred_fallthru
          _
        %s1852 = sand.u32 %s436, 1
        %s1853 = scalar_lea.sflag [#allocation6], %s1852
        %s1854 = sand.u32 %s436, 1
        %s1855 = smul.addr %s1854, 16
        %s1856 = scalar_lea.vmem [#allocation5], %s1855
        // Predicated region
        $region93: #{tpu_custom_call.1} parent=83 // pred_check
          %p1857 = pneg %p446
        $region94: #{tpu_custom_call.1} parent=83 // pred_check_branch
          %1859 = sbr.rel (%p1857) target = $region96
        $region95: #{tpu_custom_call.1} parent=83 // pred_region
          %s1861 = ssub.s32 256, 256
          %1862 = vsyncadd %s1853, %s1861
          %s1863 = smul.addr %s34, 2
          %s1864 = smul.addr %s1863, 128
          %s1865 = scalar_lea.hbm %s16, %s1864
          %s1866 = sshll.u32 %s1856, 4
          %s1867 = int_to_ptr.vmem [resolvable:$true] %s1866
          %1872 = dma.vmem_to_hbm [thread:$0]  %s1867, 256, %s1865, %s1853, 128, 128, 8
        $region96: #{tpu_custom_call.1} parent=83 // pred_fallthru
          _
      $region84: #{tpu_custom_call.1} parent=5 // pred_fallthru
        _
      %p1873 = scmp.le.s32.totalorder 2, %s25
      // Predicated region
      $region97: #{tpu_custom_call.1} parent=5 // pred_check
        %p1874 = pneg %p1873
      $region98: #{tpu_custom_call.1} parent=5 // pred_check_branch
        %1876 = sbr.rel (%p1874) target = $region100
      $region99: #{tpu_custom_call.1} parent=5 // pred_region
        %s1877 = ssub.s32 %s25, 2
        // Predicated region
        $region101: #{tpu_custom_call.1} parent=99 // pred_check
          %p1878 = pneg %p452
        $region102: #{tpu_custom_call.1} parent=99 // pred_check_branch
          %1880 = sbr.rel (%p1878) target = $region104
        $region103: #{tpu_custom_call.1} parent=99 // pred_region
          %s1881 = sand.u32 %s437, 1
          %s1882 = scalar_lea.sflag [#allocation6], %s1881
          %s1883 = sand.u32 %s437, 1
          %s1884 = smul.addr %s1883, 16
          %s1885 = scalar_lea.vmem [#allocation5], %s1884
          %1886 = dma.done %s1882, 256
        $region104: #{tpu_custom_call.1} parent=99 // pred_fallthru
          _
      $region100: #{tpu_custom_call.1} parent=5 // pred_fallthru
        _
    $region6: #{tpu_custom_call.1} parent=1 // loop_footer
      %s29 = sadd.s32 1, %s25
    $region7: #{tpu_custom_call.1} parent=1 // loop_footer_branch
      %24 = sbr.rel target = $region3
    $region8: #{tpu_custom_call.1} parent=1 // loop_exit
      _
    %1887 = vsyncpa [#allocation6], 1
    %s1888 = scalar_lea.sflag [#allocation6], 1
    %1889 = vsyncpa %s1888, 1

</llo_original>
